<compile_context>
chip_gen: v7x
topology: tpu7x:2x2x1
jax: 0.10.0
libtpu: 0.0.40
codegen_flags: <defaults>
</compile_context>

<pallas_src>
import functools

import jax
import jax.numpy as jnp
from jax.experimental import pallas as pl
from jax.experimental.pallas import tpu as pltpu

GRID_SIZE = 5
SPLINE_ORDER = 3
K = GRID_SIZE + SPLINE_ORDER                    # spline coefficients per input feature
N_GRID_PTS = GRID_SIZE + 2 * SPLINE_ORDER + 1   # knots per input feature
LANE = 128

# Uniform-knot constants (compile-time scalars). Valid because KANLinear's
# __init__ builds a uniform grid replicated across features.
# TODO(synk): efficient-KAN's update_grid() would make the grid per-feature and
# data-dependent; that path would need the vector grid inputs back.
H = 2.0 / GRID_SIZE                 # knot spacing
INV_H = 1.0 / H
S_OFFSET = SPLINE_ORDER + INV_H     # s = (x - knot_0)/h = x/h + S_OFFSET

_VMEM_BUDGET_BYTES = 48 << 20       # v7x-safe (64 MiB physical, leave headroom)


def _round_up(v, m):
    return ((v + m - 1) // m) * m


# ----------------------------- Pallas kernel --------------------------------
def _kan_decoder_kernel(x_ref, w_ref, out_ref):
    """Fused KANLinear for one batch tile.

    x_ref:   (TB, F_pad)            zero-padded activations
    w_ref:   (K+1, F_pad, O_pad)    stacked [base | spline_0 .. spline_{K-1}]
    out_ref: (TB, O_pad)
    """
    f32 = jnp.float32
    x = x_ref[...]

    # ---- base path: SiLU(x); exp() runs on the EUP.
    # TODO(synk): pl.reciprocal(..., approx=True) would also move the divide to
    # the EUP, but does not meet the 1e-4 reference tolerance; kept exact.
    silu = x * pl.reciprocal(f32(1.0) + jnp.exp(-x))
    acc = jnp.dot(silu, w_ref[0], preferred_element_type=jnp.float32)

    # ---- Cox-de Boor recursion, uniform grid folded to scalars -------------
    # s = (x - knot_0)/h, so knot_j corresponds to s == j and every
    # denominator is k*h. 2-D lane-dense, fully unrolled, divide-free.
    s = x * f32(INV_H) + f32(S_OFFSET)

    # degree-0 bases from the interval index: one floor + one compare each.
    idx = jnp.floor(s)
    bases = [jnp.where(idx == f32(j), f32(1.0), f32(0.0))
             for j in range(N_GRID_PTS - 1)]

    # shared-t identity: t_j = (s - j)/k ; b'_j = t_j*b_j + (1 - t_{j+1})*b_{j+1}
    # Each t_j is computed once (as u - j/k, scalar-constant operands) and
    # shared between the two neighbouring output bases.
    for k in range(1, SPLINE_ORDER + 1):
        inv_k = 1.0 / k
        u = s if k == 1 else s * f32(inv_k)
        t = [u] + [u - f32(j * inv_k) for j in range(1, N_GRID_PTS - k)]
        bases = [t[j] * bases[j] + (f32(1.0) - t[j + 1]) * bases[j + 1]
                 for j in range(N_GRID_PTS - 1 - k)]

    # ---- spline contraction: consume each basis while hot (no slab scratch,
    # no pack-store + reload pass); K MXU pushes into the f32 accumulator.
    # Padded feature columns give nonzero bases but hit zero weight rows.
    for c in range(K):
        acc = acc + jnp.dot(bases[c], w_ref[1 + c],
                            preferred_element_type=jnp.float32)

    out_ref[...] = acc.astype(out_ref.dtype)


def kan_linear_pallas(x_pad, w_stack, *, tile_b, vmem_limit_bytes, cost_estimate):
    """x_pad: (B_pad, F_pad) f32; w_stack: (K+1, F_pad, O_pad) f32.
    B_pad must be a multiple of tile_b."""
    b_pad, f_pad = x_pad.shape
    kp1, _, o_pad = w_stack.shape
    n_tiles = b_pad // tile_b
    return pl.pallas_call(
        _kan_decoder_kernel,
        out_shape=jax.ShapeDtypeStruct((b_pad, o_pad), jnp.float32),
        grid_spec=pltpu.PrefetchScalarGridSpec(
            num_scalar_prefetch=0,
            grid=(n_tiles,),
            in_specs=[
                pl.BlockSpec((tile_b, f_pad), lambda i: (i, 0)),
                # Grid-invariant weights: constant index_map, so they are
                # DMA'd once and stay VMEM-resident across the batch grid.
                # TODO(synk): use pipeline_mode=pl.Buffered(1) to drop the
                # second (never-refetched) weight buffer once buffer_count=1 is
                # verified on the target jax build; the VMEM budget below
                # conservatively reserves 2x w_stack instead.
                pl.BlockSpec((kp1, f_pad, o_pad), lambda i: (0, 0, 0)),
            ],
            out_specs=pl.BlockSpec((tile_b, o_pad), lambda i: (i, 0)),
        ),
        compiler_params=pltpu.CompilerParams(
            dimension_semantics=("parallel",),
            vmem_limit_bytes=vmem_limit_bytes),
        cost_estimate=cost_estimate,
    )(x_pad, w_stack)


# --------------------------- tiling / VMEM sizing -----------------------------
def _tile_vmem_bytes(tile_b, f_pad, o_pad, w_bytes):
    # x tile (double-buffered) + ~16 live f32 recursion intermediates per row
    # + out tile (double-buffered) + f32 accumulator + 2x resident weights.
    act = 4 * tile_b * (2 * f_pad + 16 * f_pad + 3 * o_pad)
    return act + 2 * w_bytes


def _pick_tile_b(b, f_pad, o_pad, w_bytes):
    if b <= 256:
        tile_b = _round_up(b, 8)              # single tile; batch too small to split
    elif b < 2048:
        tile_b = _round_up((b + 1) // 2, 8)   # >=2 tiles so both v7x TCs get work
    else:
        tile_b = 512                          # large-tile sweet spot (v6e tile sweeps)
    while tile_b > 8 and _tile_vmem_bytes(tile_b, f_pad, o_pad, w_bytes) > _VMEM_BUDGET_BYTES:
        tile_b = max(8, _round_up(tile_b // 2, 8))
    return tile_b


# ------------------------------ Decoder glue ---------------------------------
def decoder_forward(params, x, batches=None, *, n_batches=0):
    if batches is not None and n_batches > 0:
        x = jnp.concatenate([x, batches.astype(x.dtype)], axis=1)  # torch.cat((x, batches), 1)
    b, f = x.shape
    w_stack = params["w_stack"]
    _, f_pad, o_pad = w_stack.shape
    out_features = params["base_wt"].shape[1]
    w_bytes = 4 * w_stack.size

    tile_b = _pick_tile_b(b, f_pad, o_pad, w_bytes)
    b_pad = _round_up(b, tile_b)

    # Single pad of the concatenated activations (padded rows/cols are zero;
    # padded weight rows are zero and padded output rows are sliced off).
    x_pad = jax.lax.pad(x.astype(jnp.float32), jnp.float32(0.0),
                        [(0, b_pad - b, 0), (0, f_pad - f, 0)])

    footprint = _tile_vmem_bytes(tile_b, f_pad, o_pad, w_bytes)
    vmem_limit = int(min(max(32 << 20, footprint + (16 << 20)), 64 << 20))
    cost = pl.CostEstimate(
        flops=2 * b_pad * (K + 1) * f_pad * o_pad + 40 * b_pad * f_pad,
        transcendentals=b_pad * f_pad,
        bytes_accessed=4 * (b_pad * f_pad + (K + 1) * f_pad * o_pad + b_pad * o_pad))

    out = kan_linear_pallas(x_pad, w_stack, tile_b=tile_b,
                            vmem_limit_bytes=vmem_limit, cost_estimate=cost)
    return out[:b, :out_features]


def init_decoder_params(key, layer1, n_batches, in_shape):
    """Deterministic synthetic init of KANLinear(layer1 + n_batches, in_shape)."""
    in_features = layer1 + n_batches
    out_features = in_shape
    f_pad = _round_up(in_features, LANE)
    # Multiple of 256 when O > 128 (v6e/v7x MXU width); 128 otherwise.
    o_pad = _round_up(out_features, 256) if out_features > LANE else LANE

    # Uniform spline grid in [-1, 1], extended by spline_order on each side
    # (kept only for the pure-JAX reference; the kernel folds it to scalars).
    h = 2.0 / GRID_SIZE
    knots = jnp.arange(-SPLINE_ORDER, GRID_SIZE + SPLINE_ORDER + 1,
                       dtype=jnp.float32) * h - 1.0             # (N_GRID_PTS,)
    grid = jnp.tile(knots[None, :], (in_features, 1))           # (F, NGP)

    k_base, k_spline, k_scaler = jax.random.split(key, 3)
    bound = (6.0 / in_features) ** 0.5
    base_weight = jax.random.uniform(k_base, (out_features, in_features),
                                     jnp.float32, -bound, bound)
    spline_weight = 0.1 * jax.random.normal(
        k_spline, (out_features, in_features, K), jnp.float32)
    spline_scaler = jax.random.uniform(k_scaler, (out_features, in_features),
                                       jnp.float32, -bound, bound)
    scaled_spline_weight = spline_weight * spline_scaler[..., None]  # (O, F, K)

    base_wt = base_weight.T                                      # (F, O)
    spline_wt = jnp.transpose(scaled_spline_weight, (2, 1, 0))   # (K, F, O)

    # Stacked, lane-padded weights: slot 0 = base (SiLU) path, slot 1+c = spline c.
    w_stack = jnp.zeros((K + 1, f_pad, o_pad), jnp.float32)
    w_stack = w_stack.at[0, :in_features, :out_features].set(base_wt)
    w_stack = w_stack.at[1:, :in_features, :out_features].set(spline_wt)

    return {
        # reference (unpadded) parameters
        "grid": grid,
        "base_wt": base_wt,
        "spline_wt": spline_wt,
        # kernel (padded / stacked) parameters
        "w_stack": w_stack,
    }


# -------------------------- pure-JAX reference -------------------------------
def kan_linear_ref(x, grid, base_wt, spline_wt):
    base = (x * jax.nn.sigmoid(x)) @ base_wt
    xe = x[:, :, None]
    gb = grid[None, :, :]
    bases = ((xe >= gb[:, :, :-1]) & (xe < gb[:, :, 1:])).astype(jnp.float32)
    for k in range(1, SPLINE_ORDER + 1):
        bases = (((xe - gb[:, :, : -(k + 1)])
                  / (gb[:, :, k:-1] - gb[:, :, : -(k + 1)])) * bases[:, :, :-1]
                 + ((gb[:, :, k + 1:] - xe)
                    / (gb[:, :, k + 1:] - gb[:, :, 1:-k])) * bases[:, :, 1:])
    spline = jnp.einsum("bfk,kfo->bo", bases, spline_wt)
    return base + spline


# ----------------------------------- main ------------------------------------
if __name__ == "__main__":
    layer1, n_batches, in_shape, batch = 32, 2, 64, 8

    key = jax.random.PRNGKey(0)
    k_params, k_x, k_b = jax.random.split(key, 3)

    params = init_decoder_params(k_params, layer1, n_batches, in_shape)
    x = jax.random.normal(k_x, (batch, layer1), jnp.float32)
    batches = jax.nn.one_hot(
        jax.random.randint(k_b, (batch,), 0, n_batches), n_batches,
        dtype=jnp.float32)

    fwd = jax.jit(functools.partial(decoder_forward, n_batches=n_batches))
    out = jax.block_until_ready(fwd(params, x, batches))

    # sanity check against the pure-JAX reference (unpadded math)
    x_cat = jnp.concatenate([x, batches], axis=1)
    ref = kan_linear_ref(x_cat, params["grid"], params["base_wt"],
                         params["spline_wt"])
    assert out.shape == (batch, in_shape)
    assert jnp.allclose(out, ref, atol=1e-4, rtol=1e-4), "mismatch vs reference"

    print("KERNEL_OK")
</pallas_src>

<mosaic_0001>
module attributes {stable_mosaic.version = 11 : i64} {
  func.func @_kan_decoder_kernel(%arg0: i32, %arg1: memref<8x128xf32, #tpu.memory_space<vmem>>, %arg2: memref<9x128x128xf32, #tpu.memory_space<vmem>>, %arg3: memref<8x128xf32, #tpu.memory_space<vmem>>) attributes {dimension_semantics = [#tpu.dimension_semantics<parallel>], iteration_bounds = array<i64: 1>, scalar_prefetch = 0 : i64, scratch_operands = 0 : i64, tpu.core_type = #tpu.core_type<tc>, window_params = [{transform_indices = @transform_0, window_bounds = array<i64: 8, 128>}, {pipeline_mode = #tpu.pipeline_mode<synchronous>, transform_indices = @transform_1, window_bounds = array<i64: 9, 128, 128>}, {transform_indices = @transform_2, window_bounds = array<i64: 8, 128>}]} {
    %c0 = arith.constant 0 : index
    %c0_0 = arith.constant 0 : index
    %0 = vector.load %arg1[%c0, %c0_0] : memref<8x128xf32, #tpu.memory_space<vmem>>, vector<8x128xf32>
    %cst = arith.constant 0.000000e+00 : f32
    %1 = vector.broadcast %cst : f32 to vector<8x128xf32>
    %2 = arith.subf %1, %0 : vector<8x128xf32>
    %3 = math.exp %2 : vector<8x128xf32>
    %cst_1 = arith.constant 1.000000e+00 : f32
    %4 = vector.broadcast %cst_1 : f32 to vector<8x128xf32>
    %5 = arith.addf %4, %3 : vector<8x128xf32>
    %6 = tpu.reciprocal %5 : vector<8x128xf32> -> vector<8x128xf32>
    %7 = arith.mulf %0, %6 : vector<8x128xf32>
    %c0_2 = arith.constant 0 : index
    %c0_3 = arith.constant 0 : index
    %c0_4 = arith.constant 0 : index
    %8 = vector.load %arg2[%c0_2, %c0_3, %c0_4] : memref<9x128x128xf32, #tpu.memory_space<vmem>>, vector<1x128x128xf32>
    %9 = vector.shape_cast %8 : vector<1x128x128xf32> to vector<128x128xf32>
    %cst_5 = arith.constant dense<0.000000e+00> : vector<8x128xf32>
    %10 = tpu.matmul %7, %9, %cst_5 {dimension_numbers = #tpu.dot_dimension_numbers<[1], [0], [0], [1], [0, 0, 1, 1], [], []>} : vector<8x128xf32>, vector<128x128xf32>, vector<8x128xf32> -> vector<8x128xf32>
    %cst_6 = arith.constant 2.500000e+00 : f32
    %11 = vector.broadcast %cst_6 : f32 to vector<8x128xf32>
    %12 = arith.mulf %0, %11 : vector<8x128xf32>
    %cst_7 = arith.constant 5.500000e+00 : f32
    %13 = vector.broadcast %cst_7 : f32 to vector<8x128xf32>
    %14 = arith.addf %12, %13 : vector<8x128xf32>
    %15 = math.floor %14 : vector<8x128xf32>
    %cst_8 = arith.constant 0.000000e+00 : f32
    %16 = vector.broadcast %cst_8 : f32 to vector<8x128xf32>
    %17 = arith.cmpf oeq, %15, %16 : vector<8x128xf32>
    %cst_9 = arith.constant 1.000000e+00 : f32
    %cst_10 = arith.constant 0.000000e+00 : f32
    %18 = vector.broadcast %cst_9 : f32 to vector<8x128xf32>
    %19 = vector.broadcast %cst_10 : f32 to vector<8x128xf32>
    %20 = arith.select %17, %18, %19 : vector<8x128xi1>, vector<8x128xf32>
    %cst_11 = arith.constant 1.000000e+00 : f32
    %21 = vector.broadcast %cst_11 : f32 to vector<8x128xf32>
    %22 = arith.cmpf oeq, %15, %21 : vector<8x128xf32>
    %cst_12 = arith.constant 1.000000e+00 : f32
    %cst_13 = arith.constant 0.000000e+00 : f32
    %23 = vector.broadcast %cst_12 : f32 to vector<8x128xf32>
    %24 = vector.broadcast %cst_13 : f32 to vector<8x128xf32>
    %25 = arith.select %22, %23, %24 : vector<8x128xi1>, vector<8x128xf32>
    %cst_14 = arith.constant 2.000000e+00 : f32
    %26 = vector.broadcast %cst_14 : f32 to vector<8x128xf32>
    %27 = arith.cmpf oeq, %15, %26 : vector<8x128xf32>
    %cst_15 = arith.constant 1.000000e+00 : f32
    %cst_16 = arith.constant 0.000000e+00 : f32
    %28 = vector.broadcast %cst_15 : f32 to vector<8x128xf32>
    %29 = vector.broadcast %cst_16 : f32 to vector<8x128xf32>
    %30 = arith.select %27, %28, %29 : vector<8x128xi1>, vector<8x128xf32>
    %cst_17 = arith.constant 3.000000e+00 : f32
    %31 = vector.broadcast %cst_17 : f32 to vector<8x128xf32>
    %32 = arith.cmpf oeq, %15, %31 : vector<8x128xf32>
    %cst_18 = arith.constant 1.000000e+00 : f32
    %cst_19 = arith.constant 0.000000e+00 : f32
    %33 = vector.broadcast %cst_18 : f32 to vector<8x128xf32>
    %34 = vector.broadcast %cst_19 : f32 to vector<8x128xf32>
    %35 = arith.select %32, %33, %34 : vector<8x128xi1>, vector<8x128xf32>
    %cst_20 = arith.constant 4.000000e+00 : f32
    %36 = vector.broadcast %cst_20 : f32 to vector<8x128xf32>
    %37 = arith.cmpf oeq, %15, %36 : vector<8x128xf32>
    %cst_21 = arith.constant 1.000000e+00 : f32
    %cst_22 = arith.constant 0.000000e+00 : f32
    %38 = vector.broadcast %cst_21 : f32 to vector<8x128xf32>
    %39 = vector.broadcast %cst_22 : f32 to vector<8x128xf32>
    %40 = arith.select %37, %38, %39 : vector<8x128xi1>, vector<8x128xf32>
    %cst_23 = arith.constant 5.000000e+00 : f32
    %41 = vector.broadcast %cst_23 : f32 to vector<8x128xf32>
    %42 = arith.cmpf oeq, %15, %41 : vector<8x128xf32>
    %cst_24 = arith.constant 1.000000e+00 : f32
    %cst_25 = arith.constant 0.000000e+00 : f32
    %43 = vector.broadcast %cst_24 : f32 to vector<8x128xf32>
    %44 = vector.broadcast %cst_25 : f32 to vector<8x128xf32>
    %45 = arith.select %42, %43, %44 : vector<8x128xi1>, vector<8x128xf32>
    %cst_26 = arith.constant 6.000000e+00 : f32
    %46 = vector.broadcast %cst_26 : f32 to vector<8x128xf32>
    %47 = arith.cmpf oeq, %15, %46 : vector<8x128xf32>
    %cst_27 = arith.constant 1.000000e+00 : f32
    %cst_28 = arith.constant 0.000000e+00 : f32
    %48 = vector.broadcast %cst_27 : f32 to vector<8x128xf32>
    %49 = vector.broadcast %cst_28 : f32 to vector<8x128xf32>
    %50 = arith.select %47, %48, %49 : vector<8x128xi1>, vector<8x128xf32>
    %cst_29 = arith.constant 7.000000e+00 : f32
    %51 = vector.broadcast %cst_29 : f32 to vector<8x128xf32>
    %52 = arith.cmpf oeq, %15, %51 : vector<8x128xf32>
    %cst_30 = arith.constant 1.000000e+00 : f32
    %cst_31 = arith.constant 0.000000e+00 : f32
    %53 = vector.broadcast %cst_30 : f32 to vector<8x128xf32>
    %54 = vector.broadcast %cst_31 : f32 to vector<8x128xf32>
    %55 = arith.select %52, %53, %54 : vector<8x128xi1>, vector<8x128xf32>
    %cst_32 = arith.constant 8.000000e+00 : f32
    %56 = vector.broadcast %cst_32 : f32 to vector<8x128xf32>
    %57 = arith.cmpf oeq, %15, %56 : vector<8x128xf32>
    %cst_33 = arith.constant 1.000000e+00 : f32
    %cst_34 = arith.constant 0.000000e+00 : f32
    %58 = vector.broadcast %cst_33 : f32 to vector<8x128xf32>
    %59 = vector.broadcast %cst_34 : f32 to vector<8x128xf32>
    %60 = arith.select %57, %58, %59 : vector<8x128xi1>, vector<8x128xf32>
    %cst_35 = arith.constant 9.000000e+00 : f32
    %61 = vector.broadcast %cst_35 : f32 to vector<8x128xf32>
    %62 = arith.cmpf oeq, %15, %61 : vector<8x128xf32>
    %cst_36 = arith.constant 1.000000e+00 : f32
    %cst_37 = arith.constant 0.000000e+00 : f32
    %63 = vector.broadcast %cst_36 : f32 to vector<8x128xf32>
    %64 = vector.broadcast %cst_37 : f32 to vector<8x128xf32>
    %65 = arith.select %62, %63, %64 : vector<8x128xi1>, vector<8x128xf32>
    %cst_38 = arith.constant 1.000000e+01 : f32
    %66 = vector.broadcast %cst_38 : f32 to vector<8x128xf32>
    %67 = arith.cmpf oeq, %15, %66 : vector<8x128xf32>
    %cst_39 = arith.constant 1.000000e+00 : f32
    %cst_40 = arith.constant 0.000000e+00 : f32
    %68 = vector.broadcast %cst_39 : f32 to vector<8x128xf32>
    %69 = vector.broadcast %cst_40 : f32 to vector<8x128xf32>
    %70 = arith.select %67, %68, %69 : vector<8x128xi1>, vector<8x128xf32>
    %cst_41 = arith.constant 1.000000e+00 : f32
    %71 = vector.broadcast %cst_41 : f32 to vector<8x128xf32>
    %72 = arith.subf %14, %71 : vector<8x128xf32>
    %cst_42 = arith.constant 2.000000e+00 : f32
    %73 = vector.broadcast %cst_42 : f32 to vector<8x128xf32>
    %74 = arith.subf %14, %73 : vector<8x128xf32>
    %cst_43 = arith.constant 3.000000e+00 : f32
    %75 = vector.broadcast %cst_43 : f32 to vector<8x128xf32>
    %76 = arith.subf %14, %75 : vector<8x128xf32>
    %cst_44 = arith.constant 4.000000e+00 : f32
    %77 = vector.broadcast %cst_44 : f32 to vector<8x128xf32>
    %78 = arith.subf %14, %77 : vector<8x128xf32>
    %cst_45 = arith.constant 5.000000e+00 : f32
    %79 = vector.broadcast %cst_45 : f32 to vector<8x128xf32>
    %80 = arith.subf %14, %79 : vector<8x128xf32>
    %cst_46 = arith.constant 6.000000e+00 : f32
    %81 = vector.broadcast %cst_46 : f32 to vector<8x128xf32>
    %82 = arith.subf %14, %81 : vector<8x128xf32>
    %cst_47 = arith.constant 7.000000e+00 : f32
    %83 = vector.broadcast %cst_47 : f32 to vector<8x128xf32>
    %84 = arith.subf %14, %83 : vector<8x128xf32>
    %cst_48 = arith.constant 8.000000e+00 : f32
    %85 = vector.broadcast %cst_48 : f32 to vector<8x128xf32>
    %86 = arith.subf %14, %85 : vector<8x128xf32>
    %cst_49 = arith.constant 9.000000e+00 : f32
    %87 = vector.broadcast %cst_49 : f32 to vector<8x128xf32>
    %88 = arith.subf %14, %87 : vector<8x128xf32>
    %cst_50 = arith.constant 1.000000e+01 : f32
    %89 = vector.broadcast %cst_50 : f32 to vector<8x128xf32>
    %90 = arith.subf %14, %89 : vector<8x128xf32>
    %91 = arith.mulf %14, %20 : vector<8x128xf32>
    %cst_51 = arith.constant 1.000000e+00 : f32
    %92 = vector.broadcast %cst_51 : f32 to vector<8x128xf32>
    %93 = arith.subf %92, %72 : vector<8x128xf32>
    %94 = arith.mulf %93, %25 : vector<8x128xf32>
    %95 = arith.addf %91, %94 : vector<8x128xf32>
    %96 = arith.mulf %72, %25 : vector<8x128xf32>
    %cst_52 = arith.constant 1.000000e+00 : f32
    %97 = vector.broadcast %cst_52 : f32 to vector<8x128xf32>
    %98 = arith.subf %97, %74 : vector<8x128xf32>
    %99 = arith.mulf %98, %30 : vector<8x128xf32>
    %100 = arith.addf %96, %99 : vector<8x128xf32>
    %101 = arith.mulf %74, %30 : vector<8x128xf32>
    %cst_53 = arith.constant 1.000000e+00 : f32
    %102 = vector.broadcast %cst_53 : f32 to vector<8x128xf32>
    %103 = arith.subf %102, %76 : vector<8x128xf32>
    %104 = arith.mulf %103, %35 : vector<8x128xf32>
    %105 = arith.addf %101, %104 : vector<8x128xf32>
    %106 = arith.mulf %76, %35 : vector<8x128xf32>
    %cst_54 = arith.constant 1.000000e+00 : f32
    %107 = vector.broadcast %cst_54 : f32 to vector<8x128xf32>
    %108 = arith.subf %107, %78 : vector<8x128xf32>
    %109 = arith.mulf %108, %40 : vector<8x128xf32>
    %110 = arith.addf %106, %109 : vector<8x128xf32>
    %111 = arith.mulf %78, %40 : vector<8x128xf32>
    %cst_55 = arith.constant 1.000000e+00 : f32
    %112 = vector.broadcast %cst_55 : f32 to vector<8x128xf32>
    %113 = arith.subf %112, %80 : vector<8x128xf32>
    %114 = arith.mulf %113, %45 : vector<8x128xf32>
    %115 = arith.addf %111, %114 : vector<8x128xf32>
    %116 = arith.mulf %80, %45 : vector<8x128xf32>
    %cst_56 = arith.constant 1.000000e+00 : f32
    %117 = vector.broadcast %cst_56 : f32 to vector<8x128xf32>
    %118 = arith.subf %117, %82 : vector<8x128xf32>
    %119 = arith.mulf %118, %50 : vector<8x128xf32>
    %120 = arith.addf %116, %119 : vector<8x128xf32>
    %121 = arith.mulf %82, %50 : vector<8x128xf32>
    %cst_57 = arith.constant 1.000000e+00 : f32
    %122 = vector.broadcast %cst_57 : f32 to vector<8x128xf32>
    %123 = arith.subf %122, %84 : vector<8x128xf32>
    %124 = arith.mulf %123, %55 : vector<8x128xf32>
    %125 = arith.addf %121, %124 : vector<8x128xf32>
    %126 = arith.mulf %84, %55 : vector<8x128xf32>
    %cst_58 = arith.constant 1.000000e+00 : f32
    %127 = vector.broadcast %cst_58 : f32 to vector<8x128xf32>
    %128 = arith.subf %127, %86 : vector<8x128xf32>
    %129 = arith.mulf %128, %60 : vector<8x128xf32>
    %130 = arith.addf %126, %129 : vector<8x128xf32>
    %131 = arith.mulf %86, %60 : vector<8x128xf32>
    %cst_59 = arith.constant 1.000000e+00 : f32
    %132 = vector.broadcast %cst_59 : f32 to vector<8x128xf32>
    %133 = arith.subf %132, %88 : vector<8x128xf32>
    %134 = arith.mulf %133, %65 : vector<8x128xf32>
    %135 = arith.addf %131, %134 : vector<8x128xf32>
    %136 = arith.mulf %88, %65 : vector<8x128xf32>
    %cst_60 = arith.constant 1.000000e+00 : f32
    %137 = vector.broadcast %cst_60 : f32 to vector<8x128xf32>
    %138 = arith.subf %137, %90 : vector<8x128xf32>
    %139 = arith.mulf %138, %70 : vector<8x128xf32>
    %140 = arith.addf %136, %139 : vector<8x128xf32>
    %cst_61 = arith.constant 5.000000e-01 : f32
    %141 = vector.broadcast %cst_61 : f32 to vector<8x128xf32>
    %142 = arith.mulf %14, %141 : vector<8x128xf32>
    %cst_62 = arith.constant 5.000000e-01 : f32
    %143 = vector.broadcast %cst_62 : f32 to vector<8x128xf32>
    %144 = arith.subf %142, %143 : vector<8x128xf32>
    %cst_63 = arith.constant 1.000000e+00 : f32
    %145 = vector.broadcast %cst_63 : f32 to vector<8x128xf32>
    %146 = arith.subf %142, %145 : vector<8x128xf32>
    %cst_64 = arith.constant 1.500000e+00 : f32
    %147 = vector.broadcast %cst_64 : f32 to vector<8x128xf32>
    %148 = arith.subf %142, %147 : vector<8x128xf32>
    %cst_65 = arith.constant 2.000000e+00 : f32
    %149 = vector.broadcast %cst_65 : f32 to vector<8x128xf32>
    %150 = arith.subf %142, %149 : vector<8x128xf32>
    %cst_66 = arith.constant 2.500000e+00 : f32
    %151 = vector.broadcast %cst_66 : f32 to vector<8x128xf32>
    %152 = arith.subf %142, %151 : vector<8x128xf32>
    %cst_67 = arith.constant 3.000000e+00 : f32
    %153 = vector.broadcast %cst_67 : f32 to vector<8x128xf32>
    %154 = arith.subf %142, %153 : vector<8x128xf32>
    %cst_68 = arith.constant 3.500000e+00 : f32
    %155 = vector.broadcast %cst_68 : f32 to vector<8x128xf32>
    %156 = arith.subf %142, %155 : vector<8x128xf32>
    %cst_69 = arith.constant 4.000000e+00 : f32
    %157 = vector.broadcast %cst_69 : f32 to vector<8x128xf32>
    %158 = arith.subf %142, %157 : vector<8x128xf32>
    %cst_70 = arith.constant 4.500000e+00 : f32
    %159 = vector.broadcast %cst_70 : f32 to vector<8x128xf32>
    %160 = arith.subf %142, %159 : vector<8x128xf32>
    %161 = arith.mulf %142, %95 : vector<8x128xf32>
    %cst_71 = arith.constant 1.000000e+00 : f32
    %162 = vector.broadcast %cst_71 : f32 to vector<8x128xf32>
    %163 = arith.subf %162, %144 : vector<8x128xf32>
    %164 = arith.mulf %163, %100 : vector<8x128xf32>
    %165 = arith.addf %161, %164 : vector<8x128xf32>
    %166 = arith.mulf %144, %100 : vector<8x128xf32>
    %cst_72 = arith.constant 1.000000e+00 : f32
    %167 = vector.broadcast %cst_72 : f32 to vector<8x128xf32>
    %168 = arith.subf %167, %146 : vector<8x128xf32>
    %169 = arith.mulf %168, %105 : vector<8x128xf32>
    %170 = arith.addf %166, %169 : vector<8x128xf32>
    %171 = arith.mulf %146, %105 : vector<8x128xf32>
    %cst_73 = arith.constant 1.000000e+00 : f32
    %172 = vector.broadcast %cst_73 : f32 to vector<8x128xf32>
    %173 = arith.subf %172, %148 : vector<8x128xf32>
    %174 = arith.mulf %173, %110 : vector<8x128xf32>
    %175 = arith.addf %171, %174 : vector<8x128xf32>
    %176 = arith.mulf %148, %110 : vector<8x128xf32>
    %cst_74 = arith.constant 1.000000e+00 : f32
    %177 = vector.broadcast %cst_74 : f32 to vector<8x128xf32>
    %178 = arith.subf %177, %150 : vector<8x128xf32>
    %179 = arith.mulf %178, %115 : vector<8x128xf32>
    %180 = arith.addf %176, %179 : vector<8x128xf32>
    %181 = arith.mulf %150, %115 : vector<8x128xf32>
    %cst_75 = arith.constant 1.000000e+00 : f32
    %182 = vector.broadcast %cst_75 : f32 to vector<8x128xf32>
    %183 = arith.subf %182, %152 : vector<8x128xf32>
    %184 = arith.mulf %183, %120 : vector<8x128xf32>
    %185 = arith.addf %181, %184 : vector<8x128xf32>
    %186 = arith.mulf %152, %120 : vector<8x128xf32>
    %cst_76 = arith.constant 1.000000e+00 : f32
    %187 = vector.broadcast %cst_76 : f32 to vector<8x128xf32>
    %188 = arith.subf %187, %154 : vector<8x128xf32>
    %189 = arith.mulf %188, %125 : vector<8x128xf32>
    %190 = arith.addf %186, %189 : vector<8x128xf32>
    %191 = arith.mulf %154, %125 : vector<8x128xf32>
    %cst_77 = arith.constant 1.000000e+00 : f32
    %192 = vector.broadcast %cst_77 : f32 to vector<8x128xf32>
    %193 = arith.subf %192, %156 : vector<8x128xf32>
    %194 = arith.mulf %193, %130 : vector<8x128xf32>
    %195 = arith.addf %191, %194 : vector<8x128xf32>
    %196 = arith.mulf %156, %130 : vector<8x128xf32>
    %cst_78 = arith.constant 1.000000e+00 : f32
    %197 = vector.broadcast %cst_78 : f32 to vector<8x128xf32>
    %198 = arith.subf %197, %158 : vector<8x128xf32>
    %199 = arith.mulf %198, %135 : vector<8x128xf32>
    %200 = arith.addf %196, %199 : vector<8x128xf32>
    %201 = arith.mulf %158, %135 : vector<8x128xf32>
    %cst_79 = arith.constant 1.000000e+00 : f32
    %202 = vector.broadcast %cst_79 : f32 to vector<8x128xf32>
    %203 = arith.subf %202, %160 : vector<8x128xf32>
    %204 = arith.mulf %203, %140 : vector<8x128xf32>
    %205 = arith.addf %201, %204 : vector<8x128xf32>
    %cst_80 = arith.constant 0.333333343 : f32
    %206 = vector.broadcast %cst_80 : f32 to vector<8x128xf32>
    %207 = arith.mulf %14, %206 : vector<8x128xf32>
    %cst_81 = arith.constant 0.333333343 : f32
    %208 = vector.broadcast %cst_81 : f32 to vector<8x128xf32>
    %209 = arith.subf %207, %208 : vector<8x128xf32>
    %cst_82 = arith.constant 0.666666686 : f32
    %210 = vector.broadcast %cst_82 : f32 to vector<8x128xf32>
    %211 = arith.subf %207, %210 : vector<8x128xf32>
    %cst_83 = arith.constant 1.000000e+00 : f32
    %212 = vector.broadcast %cst_83 : f32 to vector<8x128xf32>
    %213 = arith.subf %207, %212 : vector<8x128xf32>
    %cst_84 = arith.constant 1.33333337 : f32
    %214 = vector.broadcast %cst_84 : f32 to vector<8x128xf32>
    %215 = arith.subf %207, %214 : vector<8x128xf32>
    %cst_85 = arith.constant 1.66666663 : f32
    %216 = vector.broadcast %cst_85 : f32 to vector<8x128xf32>
    %217 = arith.subf %207, %216 : vector<8x128xf32>
    %cst_86 = arith.constant 2.000000e+00 : f32
    %218 = vector.broadcast %cst_86 : f32 to vector<8x128xf32>
    %219 = arith.subf %207, %218 : vector<8x128xf32>
    %cst_87 = arith.constant 2.33333325 : f32
    %220 = vector.broadcast %cst_87 : f32 to vector<8x128xf32>
    %221 = arith.subf %207, %220 : vector<8x128xf32>
    %cst_88 = arith.constant 2.66666675 : f32
    %222 = vector.broadcast %cst_88 : f32 to vector<8x128xf32>
    %223 = arith.subf %207, %222 : vector<8x128xf32>
    %224 = arith.mulf %207, %165 : vector<8x128xf32>
    %cst_89 = arith.constant 1.000000e+00 : f32
    %225 = vector.broadcast %cst_89 : f32 to vector<8x128xf32>
    %226 = arith.subf %225, %209 : vector<8x128xf32>
    %227 = arith.mulf %226, %170 : vector<8x128xf32>
    %228 = arith.addf %224, %227 : vector<8x128xf32>
    %229 = arith.mulf %209, %170 : vector<8x128xf32>
    %cst_90 = arith.constant 1.000000e+00 : f32
    %230 = vector.broadcast %cst_90 : f32 to vector<8x128xf32>
    %231 = arith.subf %230, %211 : vector<8x128xf32>
    %232 = arith.mulf %231, %175 : vector<8x128xf32>
    %233 = arith.addf %229, %232 : vector<8x128xf32>
    %234 = arith.mulf %211, %175 : vector<8x128xf32>
    %cst_91 = arith.constant 1.000000e+00 : f32
    %235 = vector.broadcast %cst_91 : f32 to vector<8x128xf32>
    %236 = arith.subf %235, %213 : vector<8x128xf32>
    %237 = arith.mulf %236, %180 : vector<8x128xf32>
    %238 = arith.addf %234, %237 : vector<8x128xf32>
    %239 = arith.mulf %213, %180 : vector<8x128xf32>
    %cst_92 = arith.constant 1.000000e+00 : f32
    %240 = vector.broadcast %cst_92 : f32 to vector<8x128xf32>
    %241 = arith.subf %240, %215 : vector<8x128xf32>
    %242 = arith.mulf %241, %185 : vector<8x128xf32>
    %243 = arith.addf %239, %242 : vector<8x128xf32>
    %244 = arith.mulf %215, %185 : vector<8x128xf32>
    %cst_93 = arith.constant 1.000000e+00 : f32
    %245 = vector.broadcast %cst_93 : f32 to vector<8x128xf32>
    %246 = arith.subf %245, %217 : vector<8x128xf32>
    %247 = arith.mulf %246, %190 : vector<8x128xf32>
    %248 = arith.addf %244, %247 : vector<8x128xf32>
    %249 = arith.mulf %217, %190 : vector<8x128xf32>
    %cst_94 = arith.constant 1.000000e+00 : f32
    %250 = vector.broadcast %cst_94 : f32 to vector<8x128xf32>
    %251 = arith.subf %250, %219 : vector<8x128xf32>
    %252 = arith.mulf %251, %195 : vector<8x128xf32>
    %253 = arith.addf %249, %252 : vector<8x128xf32>
    %254 = arith.mulf %219, %195 : vector<8x128xf32>
    %cst_95 = arith.constant 1.000000e+00 : f32
    %255 = vector.broadcast %cst_95 : f32 to vector<8x128xf32>
    %256 = arith.subf %255, %221 : vector<8x128xf32>
    %257 = arith.mulf %256, %200 : vector<8x128xf32>
    %258 = arith.addf %254, %257 : vector<8x128xf32>
    %259 = arith.mulf %221, %200 : vector<8x128xf32>
    %cst_96 = arith.constant 1.000000e+00 : f32
    %260 = vector.broadcast %cst_96 : f32 to vector<8x128xf32>
    %261 = arith.subf %260, %223 : vector<8x128xf32>
    %262 = arith.mulf %261, %205 : vector<8x128xf32>
    %263 = arith.addf %259, %262 : vector<8x128xf32>
    %c1 = arith.constant 1 : index
    %c0_97 = arith.constant 0 : index
    %c0_98 = arith.constant 0 : index
    %264 = vector.load %arg2[%c1, %c0_97, %c0_98] : memref<9x128x128xf32, #tpu.memory_space<vmem>>, vector<1x128x128xf32>
    %265 = vector.shape_cast %264 : vector<1x128x128xf32> to vector<128x128xf32>
    %cst_99 = arith.constant dense<0.000000e+00> : vector<8x128xf32>
    %266 = tpu.matmul %228, %265, %cst_99 {dimension_numbers = #tpu.dot_dimension_numbers<[1], [0], [0], [1], [0, 0, 1, 1], [], []>} : vector<8x128xf32>, vector<128x128xf32>, vector<8x128xf32> -> vector<8x128xf32>
    %267 = arith.addf %10, %266 : vector<8x128xf32>
    %c2 = arith.constant 2 : index
    %c0_100 = arith.constant 0 : index
    %c0_101 = arith.constant 0 : index
    %268 = vector.load %arg2[%c2, %c0_100, %c0_101] : memref<9x128x128xf32, #tpu.memory_space<vmem>>, vector<1x128x128xf32>
    %269 = vector.shape_cast %268 : vector<1x128x128xf32> to vector<128x128xf32>
    %cst_102 = arith.constant dense<0.000000e+00> : vector<8x128xf32>
    %270 = tpu.matmul %233, %269, %cst_102 {dimension_numbers = #tpu.dot_dimension_numbers<[1], [0], [0], [1], [0, 0, 1, 1], [], []>} : vector<8x128xf32>, vector<128x128xf32>, vector<8x128xf32> -> vector<8x128xf32>
    %271 = arith.addf %267, %270 : vector<8x128xf32>
    %c3 = arith.constant 3 : index
    %c0_103 = arith.constant 0 : index
    %c0_104 = arith.constant 0 : index
    %272 = vector.load %arg2[%c3, %c0_103, %c0_104] : memref<9x128x128xf32, #tpu.memory_space<vmem>>, vector<1x128x128xf32>
    %273 = vector.shape_cast %272 : vector<1x128x128xf32> to vector<128x128xf32>
    %cst_105 = arith.constant dense<0.000000e+00> : vector<8x128xf32>
    %274 = tpu.matmul %238, %273, %cst_105 {dimension_numbers = #tpu.dot_dimension_numbers<[1], [0], [0], [1], [0, 0, 1, 1], [], []>} : vector<8x128xf32>, vector<128x128xf32>, vector<8x128xf32> -> vector<8x128xf32>
    %275 = arith.addf %271, %274 : vector<8x128xf32>
    %c4 = arith.constant 4 : index
    %c0_106 = arith.constant 0 : index
    %c0_107 = arith.constant 0 : index
    %276 = vector.load %arg2[%c4, %c0_106, %c0_107] : memref<9x128x128xf32, #tpu.memory_space<vmem>>, vector<1x128x128xf32>
    %277 = vector.shape_cast %276 : vector<1x128x128xf32> to vector<128x128xf32>
    %cst_108 = arith.constant dense<0.000000e+00> : vector<8x128xf32>
    %278 = tpu.matmul %243, %277, %cst_108 {dimension_numbers = #tpu.dot_dimension_numbers<[1], [0], [0], [1], [0, 0, 1, 1], [], []>} : vector<8x128xf32>, vector<128x128xf32>, vector<8x128xf32> -> vector<8x128xf32>
    %279 = arith.addf %275, %278 : vector<8x128xf32>
    %c5 = arith.constant 5 : index
    %c0_109 = arith.constant 0 : index
    %c0_110 = arith.constant 0 : index
    %280 = vector.load %arg2[%c5, %c0_109, %c0_110] : memref<9x128x128xf32, #tpu.memory_space<vmem>>, vector<1x128x128xf32>
    %281 = vector.shape_cast %280 : vector<1x128x128xf32> to vector<128x128xf32>
    %cst_111 = arith.constant dense<0.000000e+00> : vector<8x128xf32>
    %282 = tpu.matmul %248, %281, %cst_111 {dimension_numbers = #tpu.dot_dimension_numbers<[1], [0], [0], [1], [0, 0, 1, 1], [], []>} : vector<8x128xf32>, vector<128x128xf32>, vector<8x128xf32> -> vector<8x128xf32>
    %283 = arith.addf %279, %282 : vector<8x128xf32>
    %c6 = arith.constant 6 : index
    %c0_112 = arith.constant 0 : index
    %c0_113 = arith.constant 0 : index
    %284 = vector.load %arg2[%c6, %c0_112, %c0_113] : memref<9x128x128xf32, #tpu.memory_space<vmem>>, vector<1x128x128xf32>
    %285 = vector.shape_cast %284 : vector<1x128x128xf32> to vector<128x128xf32>
    %cst_114 = arith.constant dense<0.000000e+00> : vector<8x128xf32>
    %286 = tpu.matmul %253, %285, %cst_114 {dimension_numbers = #tpu.dot_dimension_numbers<[1], [0], [0], [1], [0, 0, 1, 1], [], []>} : vector<8x128xf32>, vector<128x128xf32>, vector<8x128xf32> -> vector<8x128xf32>
    %287 = arith.addf %283, %286 : vector<8x128xf32>
    %c7 = arith.constant 7 : index
    %c0_115 = arith.constant 0 : index
    %c0_116 = arith.constant 0 : index
    %288 = vector.load %arg2[%c7, %c0_115, %c0_116] : memref<9x128x128xf32, #tpu.memory_space<vmem>>, vector<1x128x128xf32>
    %289 = vector.shape_cast %288 : vector<1x128x128xf32> to vector<128x128xf32>
    %cst_117 = arith.constant dense<0.000000e+00> : vector<8x128xf32>
    %290 = tpu.matmul %258, %289, %cst_117 {dimension_numbers = #tpu.dot_dimension_numbers<[1], [0], [0], [1], [0, 0, 1, 1], [], []>} : vector<8x128xf32>, vector<128x128xf32>, vector<8x128xf32> -> vector<8x128xf32>
    %291 = arith.addf %287, %290 : vector<8x128xf32>
    %c8 = arith.constant 8 : index
    %c0_118 = arith.constant 0 : index
    %c0_119 = arith.constant 0 : index
    %292 = vector.load %arg2[%c8, %c0_118, %c0_119] : memref<9x128x128xf32, #tpu.memory_space<vmem>>, vector<1x128x128xf32>
    %293 = vector.shape_cast %292 : vector<1x128x128xf32> to vector<128x128xf32>
    %cst_120 = arith.constant dense<0.000000e+00> : vector<8x128xf32>
    %294 = tpu.matmul %263, %293, %cst_120 {dimension_numbers = #tpu.dot_dimension_numbers<[1], [0], [0], [1], [0, 0, 1, 1], [], []>} : vector<8x128xf32>, vector<128x128xf32>, vector<8x128xf32> -> vector<8x128xf32>
    %295 = arith.addf %291, %294 : vector<8x128xf32>
    %c0_121 = arith.constant 0 : index
    %c0_122 = arith.constant 0 : index
    %296 = vector.load %arg3[%c0_121, %c0_122] : memref<8x128xf32, #tpu.memory_space<vmem>>, vector<8x128xf32>
    tpu.vector_store %arg3[%c0_121, %c0_122], %295 {strides = array<i32>} : memref<8x128xf32, #tpu.memory_space<vmem>>, vector<8x128xf32>,
    return
  }
  func.func @transform_0(%arg0: i32) -> (i32, i32) {
    %c0_i32 = arith.constant 0 : i32
    %c0_i32_0 = arith.constant 0 : i32
    return %arg0, %c0_i32 : i32, i32
  }
  func.func @transform_1(%arg0: i32) -> (i32, i32, i32) {
    %c0_i32 = arith.constant 0 : i32
    %c0_i32_0 = arith.constant 0 : i32
    %c0_i32_1 = arith.constant 0 : i32
    %c0_i32_2 = arith.constant 0 : i32
    return %c0_i32, %c0_i32_0, %c0_i32_1 : i32, i32, i32
  }
  func.func @transform_2(%arg0: i32) -> (i32, i32) {
    %c0_i32 = arith.constant 0 : i32
    %c0_i32_0 = arith.constant 0 : i32
    return %arg0, %c0_i32 : i32, i32
  }
}

</mosaic_0001>

<llo_original>
// kernel: decoder_forward.1
$region0: #{decoder_forward.1}
  #allocation0 [shape = 'u32[]', space=smem, size = 0x4, offset = 0x4, fixed_abs, tag = 'smem constant byte address 0x4 - core index']
  #allocation1 [shape = 'u32[144,128]{1,0:T(1,128)}', space=vmem, size = 0x12000, scoped, tag = 'internal scratch']
  %s0 = inlined_call_operand.vmem [shape: f32[8,128], index: 0, kind: input, shape index: {}]
  %s1 = inlined_call_operand.hbm [shape: f32[9,128,128], index: 1, kind: input, shape index: {}]
  %s2 = inlined_call_operand.hbm [shape: f32[8,128], index: 2, kind: output, shape index: {}]
  %s3 = sld [smem:[#allocation0]]
  $region22: #{decoder_forward.1} parent=0
    _
  %s5 = ssub.s32 1, %s3
  %s6 = scalar_select 0, %s5, %s3
  $region1: #{decoder_forward.1} parent=0
    #allocation2 [shape = 'u8[589824]{0}', space=vmem, size = 0x90000, scoped, tag = 'input window, operand 1, single buffered']
    #allocation3 [shape = 's32[1]{0}', space=sflag, size = 0x4, scoped, tag = 'scoped memory for decoder_forward.1']
    #allocation4 [shape = 's32[1]{0}', space=sflag, size = 0x4, scoped, tag = 'scoped memory for decoder_forward.1']
    #allocation5 [shape = 'u8[4096]{0}', space=vmem, size = 0x1000, scoped, tag = 'output window, operand 0, single buffered']
    %7 = vsyncpa [#allocation3], 0
    %8 = vsyncpa [#allocation4], 0
    // Predicated region
    $region2: #{decoder_forward.1} parent=1 // pred_check
      _
    $region3: #{decoder_forward.1} parent=1 // pred_check_branch
      %10 = sbr.rel (0) target = $region5
    $region4: #{decoder_forward.1} parent=1 // pred_region
      _
    $region5: #{decoder_forward.1} parent=1 // pred_fallthru
      _
    // Predicated region
    $region6: #{decoder_forward.1} parent=1 // pred_check
      _
    $region7: #{decoder_forward.1} parent=1 // pred_check_branch
      %12 = sbr.rel (0) target = $region9
    $region8: #{decoder_forward.1} parent=1 // pred_region
      %s14 = ssub.s32 18432, 18432
      %15 = vsyncadd [#allocation3], %s14
      %s16 = sshll.u32 [#allocation2], 4
      %s17 = int_to_ptr.vmem [resolvable:$true] %s16
      %22 = dma.hbm_to_vmem [thread:$0]  %s1, 18432, %s17, [#allocation3], 128, 128, 8
    $region9: #{decoder_forward.1} parent=1 // pred_fallthru
      _
    // Predicated region
    $region10: #{decoder_forward.1} parent=1 // pred_check
      _
    $region11: #{decoder_forward.1} parent=1 // pred_check_branch
      %24 = sbr.rel (0) target = $region13
    $region12: #{decoder_forward.1} parent=1 // pred_region
      %25 = dma.done [#allocation3], 18432
    $region13: #{decoder_forward.1} parent=1 // pred_fallthru
      _
    %v26 = vld [vmem:[%s0] sm:$0xff]
    %v27 = vsub.f32 0.0, %v26
    %v28 = vmul.f32 %v27, 1.442695
    %v29 = vpow.pop %v28
    %v30 = vadd.f32 %v29, 1.0
    %v31 = vrcp.pop %v30
    %v32 = vmul.f32 %v26, %v31
    %v33 = vld [vmem:[#allocation2] sm:$0xff]
    %v34 = vld [vmem:[#allocation2 + $0x8] sm:$0xff]
    %v35 = vld [vmem:[#allocation2 + $0x10] sm:$0xff]
    %v36 = vld [vmem:[#allocation2 + $0x18] sm:$0xff]
    %v37 = vld [vmem:[#allocation2 + $0x20] sm:$0xff]
    %v38 = vld [vmem:[#allocation2 + $0x28] sm:$0xff]
    %v39 = vld [vmem:[#allocation2 + $0x30] sm:$0xff]
    %v40 = vld [vmem:[#allocation2 + $0x38] sm:$0xff]
    %v41 = vld [vmem:[#allocation2 + $0x40] sm:$0xff]
    %v42 = vld [vmem:[#allocation2 + $0x48] sm:$0xff]
    %v43 = vld [vmem:[#allocation2 + $0x50] sm:$0xff]
    %v44 = vld [vmem:[#allocation2 + $0x58] sm:$0xff]
    %v45 = vld [vmem:[#allocation2 + $0x60] sm:$0xff]
    %v46 = vld [vmem:[#allocation2 + $0x68] sm:$0xff]
    %v47 = vld [vmem:[#allocation2 + $0x70] sm:$0xff]
    %v48 = vld [vmem:[#allocation2 + $0x78] sm:$0xff]
    %v49 = vmul.f32 %v26, 2.5
    %v50 = vadd.f32 %v49, 5.5
    %v51 = vfloor.f32 %v50
    %vm52 = vcmp.eq.f32.partialorder %v51, 0.0
    %v53 = vsel %vm52, 1.0, 0.0
    %vm54 = vcmp.eq.f32.partialorder %v51, 1.0
    %v55 = vsel %vm54, 1.0, 0.0
    %vm56 = vcmp.eq.f32.partialorder %v51, 2.0
    %v57 = vsel %vm56, 1.0, 0.0
    %vm58 = vcmp.eq.f32.partialorder %v51, 3.0
    %v59 = vsel %vm58, 1.0, 0.0
    %vm60 = vcmp.eq.f32.partialorder %v51, 4.0
    %v61 = vsel %vm60, 1.0, 0.0
    %vm62 = vcmp.eq.f32.partialorder %v51, 5.0
    %v63 = vsel %vm62, 1.0, 0.0
    %vm64 = vcmp.eq.f32.partialorder %v51, 6.0
    %v65 = vsel %vm64, 1.0, 0.0
    %vm66 = vcmp.eq.f32.partialorder %v51, 7.0
    %v67 = vsel %vm66, 1.0, 0.0
    %vm68 = vcmp.eq.f32.partialorder %v51, 8.0
    %v69 = vsel %vm68, 1.0, 0.0
    %vm70 = vcmp.eq.f32.partialorder %v51, 9.0
    %v71 = vsel %vm70, 1.0, 0.0
    %vm72 = vcmp.eq.f32.partialorder %v51, 10.0
    %v73 = vsel %vm72, 1.0, 0.0
    %v74 = vsub.f32 %v50, 1.0
    %v75 = vsub.f32 %v50, 2.0
    %v76 = vsub.f32 %v50, 3.0
    %v77 = vsub.f32 %v50, 4.0
    %v78 = vsub.f32 %v50, 5.0
    %v79 = vsub.f32 %v50, 6.0
    %v80 = vsub.f32 %v50, 7.0
    %v81 = vsub.f32 %v50, 8.0
    %v82 = vsub.f32 %v50, 9.0
    %v83 = vsub.f32 %v50, 10.0
    %v84 = vmul.f32 %v50, %v53
    %v85 = vsub.f32 1.0, %v74
    %v86 = vmul.f32 %v85, %v55
    %v87 = vadd.f32 %v84, %v86
    %v88 = vmul.f32 %v74, %v55
    %v89 = vsub.f32 1.0, %v75
    %v90 = vmul.f32 %v89, %v57
    %v91 = vadd.f32 %v88, %v90
    %v92 = vmul.f32 %v75, %v57
    %v93 = vsub.f32 1.0, %v76
    %v94 = vmul.f32 %v93, %v59
    %v95 = vadd.f32 %v92, %v94
    %v96 = vmul.f32 %v76, %v59
    %v97 = vsub.f32 1.0, %v77
    %v98 = vmul.f32 %v97, %v61
    %v99 = vadd.f32 %v96, %v98
    %v100 = vmul.f32 %v77, %v61
    %v101 = vsub.f32 1.0, %v78
    %v102 = vmul.f32 %v101, %v63
    %v103 = vadd.f32 %v100, %v102
    %v104 = vmul.f32 %v78, %v63
    %v105 = vsub.f32 1.0, %v79
    %v106 = vmul.f32 %v105, %v65
    %v107 = vadd.f32 %v104, %v106
    %v108 = vmul.f32 %v79, %v65
    %v109 = vsub.f32 1.0, %v80
    %v110 = vmul.f32 %v109, %v67
    %v111 = vadd.f32 %v108, %v110
    %v112 = vmul.f32 %v80, %v67
    %v113 = vsub.f32 1.0, %v81
    %v114 = vmul.f32 %v113, %v69
    %v115 = vadd.f32 %v112, %v114
    %v116 = vmul.f32 %v81, %v69
    %v117 = vsub.f32 1.0, %v82
    %v118 = vmul.f32 %v117, %v71
    %v119 = vadd.f32 %v116, %v118
    %v120 = vmul.f32 %v82, %v71
    %v121 = vsub.f32 1.0, %v83
    %v122 = vmul.f32 %v121, %v73
    %v123 = vadd.f32 %v120, %v122
    %v124 = vmul.f32 %v50, 0.5
    %v125 = vsub.f32 %v124, 0.5
    %v126 = vsub.f32 %v124, 1.0
    %v127 = vsub.f32 %v124, 1.5
    %v128 = vsub.f32 %v124, 2.0
    %v129 = vsub.f32 %v124, 2.5
    %v130 = vsub.f32 %v124, 3.0
    %v131 = vsub.f32 %v124, 3.5
    %v132 = vsub.f32 %v124, 4.0
    %v133 = vsub.f32 %v124, 4.5
    %v134 = vmul.f32 %v124, %v87
    %v135 = vsub.f32 1.0, %v125
    %v136 = vmul.f32 %v135, %v91
    %v137 = vadd.f32 %v134, %v136
    %v138 = vmul.f32 %v125, %v91
    %v139 = vsub.f32 1.0, %v126
    %v140 = vmul.f32 %v139, %v95
    %v141 = vadd.f32 %v138, %v140
    %v142 = vmul.f32 %v126, %v95
    %v143 = vsub.f32 1.0, %v127
    %v144 = vmul.f32 %v143, %v99
    %v145 = vadd.f32 %v142, %v144
    %v146 = vmul.f32 %v127, %v99
    %v147 = vsub.f32 1.0, %v128
    %v148 = vmul.f32 %v147, %v103
    %v149 = vadd.f32 %v146, %v148
    %v150 = vmul.f32 %v128, %v103
    %v151 = vsub.f32 1.0, %v129
    %v152 = vmul.f32 %v151, %v107
    %v153 = vadd.f32 %v150, %v152
    %v154 = vmul.f32 %v129, %v107
    %v155 = vsub.f32 1.0, %v130
    %v156 = vmul.f32 %v155, %v111
    %v157 = vadd.f32 %v154, %v156
    %v158 = vmul.f32 %v130, %v111
    %v159 = vsub.f32 1.0, %v131
    %v160 = vmul.f32 %v159, %v115
    %v161 = vadd.f32 %v158, %v160
    %v162 = vmul.f32 %v131, %v115
    %v163 = vsub.f32 1.0, %v132
    %v164 = vmul.f32 %v163, %v119
    %v165 = vadd.f32 %v162, %v164
    %v166 = vmul.f32 %v132, %v119
    %v167 = vsub.f32 1.0, %v133
    %v168 = vmul.f32 %v167, %v123
    %v169 = vadd.f32 %v166, %v168
    %v170 = vmul.f32 %v50, 0.33333334
    %v171 = vsub.f32 %v170, 0.33333334
    %v172 = vsub.f32 %v170, 0.6666667
    %v173 = vsub.f32 %v170, 1.0
    %v174 = vsub.f32 %v170, 1.3333334
    %v175 = vsub.f32 %v170, 1.6666666
    %v176 = vsub.f32 %v170, 2.0
    %v177 = vsub.f32 %v170, 2.3333333
    %v178 = vsub.f32 %v170, 2.6666667
    %v179 = vmul.f32 %v170, %v137
    %v180 = vsub.f32 1.0, %v171
    %v181 = vmul.f32 %v180, %v141
    %v182 = vadd.f32 %v179, %v181
    %v183 = vmul.f32 %v171, %v141
    %v184 = vsub.f32 1.0, %v172
    %v185 = vmul.f32 %v184, %v145
    %v186 = vadd.f32 %v183, %v185
    %v187 = vmul.f32 %v172, %v145
    %v188 = vsub.f32 1.0, %v173
    %v189 = vmul.f32 %v188, %v149
    %v190 = vadd.f32 %v187, %v189
    %v191 = vmul.f32 %v173, %v149
    %v192 = vsub.f32 1.0, %v174
    %v193 = vmul.f32 %v192, %v153
    %v194 = vadd.f32 %v191, %v193
    %v195 = vmul.f32 %v174, %v153
    %v196 = vsub.f32 1.0, %v175
    %v197 = vmul.f32 %v196, %v157
    %v198 = vadd.f32 %v195, %v197
    %v199 = vmul.f32 %v175, %v157
    %v200 = vsub.f32 1.0, %v176
    %v201 = vmul.f32 %v200, %v161
    %v202 = vadd.f32 %v199, %v201
    %v203 = vmul.f32 %v176, %v161
    %v204 = vsub.f32 1.0, %v177
    %v205 = vmul.f32 %v204, %v165
    %v206 = vadd.f32 %v203, %v205
    %v207 = vmul.f32 %v177, %v165
    %v208 = vsub.f32 1.0, %v178
    %v209 = vmul.f32 %v208, %v169
    %v210 = vadd.f32 %v207, %v209
    %s211 = scalar_lea.vmem [#allocation2], 128
    %v212 = vld [vmem:[%s211] sm:$0xff]
    %v213 = vld [vmem:[%s211 + $0x8] sm:$0xff]
    %v214 = vld [vmem:[%s211 + $0x10] sm:$0xff]
    %v215 = vld [vmem:[%s211 + $0x18] sm:$0xff]
    %v216 = vld [vmem:[%s211 + $0x20] sm:$0xff]
    %v217 = vld [vmem:[%s211 + $0x28] sm:$0xff]
    %v218 = vld [vmem:[%s211 + $0x30] sm:$0xff]
    %v219 = vld [vmem:[%s211 + $0x38] sm:$0xff]
    %v220 = vld [vmem:[%s211 + $0x40] sm:$0xff]
    %v221 = vld [vmem:[%s211 + $0x48] sm:$0xff]
    %v222 = vld [vmem:[%s211 + $0x50] sm:$0xff]
    %v223 = vld [vmem:[%s211 + $0x58] sm:$0xff]
    %v224 = vld [vmem:[%s211 + $0x60] sm:$0xff]
    %v225 = vld [vmem:[%s211 + $0x68] sm:$0xff]
    %v226 = vld [vmem:[%s211 + $0x70] sm:$0xff]
    %v227 = vld [vmem:[%s211 + $0x78] sm:$0xff]
    %228 = vmatprep.subr.mxu0 0.0
    %229 = vmatpush1.msra.mxu0 %v212
    %230 = vmatprep.subr.mxu0 0.0
    %231 = vmatpush1.msra.mxu0 %v213
    %232 = vmatprep.subr.mxu0 0.0
    %233 = vmatpush1.msra.mxu0 %v214
    %234 = vmatprep.subr.mxu0 0.0
    %235 = vmatpush1.msra.mxu0 %v215
    %236 = vmatprep.subr.mxu0 0.0
    %237 = vmatpush1.msra.mxu0 %v216
    %238 = vmatprep.subr.mxu0 0.0
    %239 = vmatpush1.msra.mxu0 %v217
    %240 = vmatprep.subr.mxu0 0.0
    %241 = vmatpush1.msra.mxu0 %v218
    %242 = vmatprep.subr.mxu0 0.0
    %243 = vmatpush1.msra.mxu0 %v219
    %244 = vmatprep.subr.mxu0 0.0
    %245 = vmatpush1.msra.mxu0 %v220
    %246 = vmatprep.subr.mxu0 0.0
    %247 = vmatpush1.msra.mxu0 %v221
    %248 = vmatprep.subr.mxu0 0.0
    %249 = vmatpush1.msra.mxu0 %v222
    %250 = vmatprep.subr.mxu0 0.0
    %251 = vmatpush1.msra.mxu0 %v223
    %252 = vmatprep.subr.mxu0 0.0
    %253 = vmatpush1.msra.mxu0 %v224
    %254 = vmatprep.subr.mxu0 0.0
    %255 = vmatpush1.msra.mxu0 %v225
    %256 = vmatprep.subr.mxu0 0.0
    %257 = vmatpush1.msra.mxu0 %v226
    %258 = vmatprep.subr.mxu0 0.0
    %259 = vmatpush1.msra.mxu0 %v227
    %260 = vmatprep.subr.mxu0 0.0
    %261 = vmatpush1.msra.mxu0 0.0
    %262 = vmatprep.subr.mxu0 0.0
    %263 = vmatpush1.msra.mxu0 0.0
    %264 = vmatprep.subr.mxu0 0.0
    %265 = vmatpush1.msra.mxu0 0.0
    %266 = vmatprep.subr.mxu0 0.0
    %267 = vmatpush1.msra.mxu0 0.0
    %268 = vmatprep.subr.mxu0 0.0
    %269 = vmatpush1.msra.mxu0 0.0
    %270 = vmatprep.subr.mxu0 0.0
    %271 = vmatpush1.msra.mxu0 0.0
    %272 = vmatprep.subr.mxu0 0.0
    %273 = vmatpush1.msra.mxu0 0.0
    %274 = vmatprep.subr.mxu0 0.0
    %275 = vmatpush1.msra.mxu0 0.0
    %276 = vmatprep.subr.mxu0 0.0
    %277 = vmatpush1.msra.mxu0 0.0
    %278 = vmatprep.subr.mxu0 0.0
    %279 = vmatpush1.msra.mxu0 0.0
    %280 = vmatprep.subr.mxu0 0.0
    %281 = vmatpush1.msra.mxu0 0.0
    %282 = vmatprep.subr.mxu0 0.0
    %283 = vmatpush1.msra.mxu0 0.0
    %284 = vmatprep.subr.mxu0 0.0
    %285 = vmatpush1.msra.mxu0 0.0
    %286 = vmatprep.subr.mxu0 0.0
    %287 = vmatpush1.msra.mxu0 0.0
    %288 = vmatprep.subr.mxu0 0.0
    %289 = vmatpush1.msra.mxu0 0.0
    %290 = vmatprep.subr.mxu0 0.0
    %291 = vmatpush1.msra.mxu0 0.0
    %292 = vmatprep.mubr.f32.mxu0 0.0
    %293 = vmatmul.mubr.f32.gmra.mrb[0].mxu0 %v182
    %v294 = vpop.f32.mrb[0].mxu0
    %v295 = vadd.f32 0.0, %v294
    %v296 = vpop.f32.mrb[0].mxu0
    %297 = vdwg.mxu0
    %298 = vmatprep.subr.mxu0 0.0
    %299 = vmatpush1.msra.mxu0 %v33
    %300 = vmatprep.subr.mxu0 0.0
    %301 = vmatpush1.msra.mxu0 %v34
    %302 = vmatprep.subr.mxu0 0.0
    %303 = vmatpush1.msra.mxu0 %v35
    %304 = vmatprep.subr.mxu0 0.0
    %305 = vmatpush1.msra.mxu0 %v36
    %306 = vmatprep.subr.mxu0 0.0
    %307 = vmatpush1.msra.mxu0 %v37
    %308 = vmatprep.subr.mxu0 0.0
    %309 = vmatpush1.msra.mxu0 %v38
    %310 = vmatprep.subr.mxu0 0.0
    %311 = vmatpush1.msra.mxu0 %v39
    %312 = vmatprep.subr.mxu0 0.0
    %313 = vmatpush1.msra.mxu0 %v40
    %314 = vmatprep.subr.mxu0 0.0
    %315 = vmatpush1.msra.mxu0 %v41
    %316 = vmatprep.subr.mxu0 0.0
    %317 = vmatpush1.msra.mxu0 %v42
    %318 = vmatprep.subr.mxu0 0.0
    %319 = vmatpush1.msra.mxu0 %v43
    %320 = vmatprep.subr.mxu0 0.0
    %321 = vmatpush1.msra.mxu0 %v44
    %322 = vmatprep.subr.mxu0 0.0
    %323 = vmatpush1.msra.mxu0 %v45
    %324 = vmatprep.subr.mxu0 0.0
    %325 = vmatpush1.msra.mxu0 %v46
    %326 = vmatprep.subr.mxu0 0.0
    %327 = vmatpush1.msra.mxu0 %v47
    %328 = vmatprep.subr.mxu0 0.0
    %329 = vmatpush1.msra.mxu0 %v48
    %330 = vmatprep.subr.mxu0 0.0
    %331 = vmatpush1.msra.mxu0 0.0
    %332 = vmatprep.subr.mxu0 0.0
    %333 = vmatpush1.msra.mxu0 0.0
    %334 = vmatprep.subr.mxu0 0.0
    %335 = vmatpush1.msra.mxu0 0.0
    %336 = vmatprep.subr.mxu0 0.0
    %337 = vmatpush1.msra.mxu0 0.0
    %338 = vmatprep.subr.mxu0 0.0
    %339 = vmatpush1.msra.mxu0 0.0
    %340 = vmatprep.subr.mxu0 0.0
    %341 = vmatpush1.msra.mxu0 0.0
    %342 = vmatprep.subr.mxu0 0.0
    %343 = vmatpush1.msra.mxu0 0.0
    %344 = vmatprep.subr.mxu0 0.0
    %345 = vmatpush1.msra.mxu0 0.0
    %346 = vmatprep.subr.mxu0 0.0
    %347 = vmatpush1.msra.mxu0 0.0
    %348 = vmatprep.subr.mxu0 0.0
    %349 = vmatpush1.msra.mxu0 0.0
    %350 = vmatprep.subr.mxu0 0.0
    %351 = vmatpush1.msra.mxu0 0.0
    %352 = vmatprep.subr.mxu0 0.0
    %353 = vmatpush1.msra.mxu0 0.0
    %354 = vmatprep.subr.mxu0 0.0
    %355 = vmatpush1.msra.mxu0 0.0
    %356 = vmatprep.subr.mxu0 0.0
    %357 = vmatpush1.msra.mxu0 0.0
    %358 = vmatprep.subr.mxu0 0.0
    %359 = vmatpush1.msra.mxu0 0.0
    %360 = vmatprep.subr.mxu0 0.0
    %361 = vmatpush1.msra.mxu0 0.0
    %362 = vmatprep.mubr.f32.mxu0 0.0
    %363 = vmatmul.mubr.f32.gmra.mrb[0].mxu0 %v32
    %v364 = vpop.f32.mrb[0].mxu0
    %v365 = vadd.f32 %v295, %v364
    %v366 = vpop.f32.mrb[0].mxu0
    %367 = vdwg.mxu0
    %s368 = scalar_lea.vmem [#allocation2], 256
    %v369 = vld [vmem:[%s368] sm:$0xff]
    %v370 = vld [vmem:[%s368 + $0x8] sm:$0xff]
    %v371 = vld [vmem:[%s368 + $0x10] sm:$0xff]
    %v372 = vld [vmem:[%s368 + $0x18] sm:$0xff]
    %v373 = vld [vmem:[%s368 + $0x20] sm:$0xff]
    %v374 = vld [vmem:[%s368 + $0x28] sm:$0xff]
    %v375 = vld [vmem:[%s368 + $0x30] sm:$0xff]
    %v376 = vld [vmem:[%s368 + $0x38] sm:$0xff]
    %v377 = vld [vmem:[%s368 + $0x40] sm:$0xff]
    %v378 = vld [vmem:[%s368 + $0x48] sm:$0xff]
    %v379 = vld [vmem:[%s368 + $0x50] sm:$0xff]
    %v380 = vld [vmem:[%s368 + $0x58] sm:$0xff]
    %v381 = vld [vmem:[%s368 + $0x60] sm:$0xff]
    %v382 = vld [vmem:[%s368 + $0x68] sm:$0xff]
    %v383 = vld [vmem:[%s368 + $0x70] sm:$0xff]
    %v384 = vld [vmem:[%s368 + $0x78] sm:$0xff]
    %385 = vmatprep.subr.mxu0 0.0
    %386 = vmatpush1.msra.mxu0 %v369
    %387 = vmatprep.subr.mxu0 0.0
    %388 = vmatpush1.msra.mxu0 %v370
    %389 = vmatprep.subr.mxu0 0.0
    %390 = vmatpush1.msra.mxu0 %v371
    %391 = vmatprep.subr.mxu0 0.0
    %392 = vmatpush1.msra.mxu0 %v372
    %393 = vmatprep.subr.mxu0 0.0
    %394 = vmatpush1.msra.mxu0 %v373
    %395 = vmatprep.subr.mxu0 0.0
    %396 = vmatpush1.msra.mxu0 %v374
    %397 = vmatprep.subr.mxu0 0.0
    %398 = vmatpush1.msra.mxu0 %v375
    %399 = vmatprep.subr.mxu0 0.0
    %400 = vmatpush1.msra.mxu0 %v376
    %401 = vmatprep.subr.mxu0 0.0
    %402 = vmatpush1.msra.mxu0 %v377
    %403 = vmatprep.subr.mxu0 0.0
    %404 = vmatpush1.msra.mxu0 %v378
    %405 = vmatprep.subr.mxu0 0.0
    %406 = vmatpush1.msra.mxu0 %v379
    %407 = vmatprep.subr.mxu0 0.0
    %408 = vmatpush1.msra.mxu0 %v380
    %409 = vmatprep.subr.mxu0 0.0
    %410 = vmatpush1.msra.mxu0 %v381
    %411 = vmatprep.subr.mxu0 0.0
    %412 = vmatpush1.msra.mxu0 %v382
    %413 = vmatprep.subr.mxu0 0.0
    %414 = vmatpush1.msra.mxu0 %v383
    %415 = vmatprep.subr.mxu0 0.0
    %416 = vmatpush1.msra.mxu0 %v384
    %417 = vmatprep.subr.mxu0 0.0
    %418 = vmatpush1.msra.mxu0 0.0
    %419 = vmatprep.subr.mxu0 0.0
    %420 = vmatpush1.msra.mxu0 0.0
    %421 = vmatprep.subr.mxu0 0.0
    %422 = vmatpush1.msra.mxu0 0.0
    %423 = vmatprep.subr.mxu0 0.0
    %424 = vmatpush1.msra.mxu0 0.0
    %425 = vmatprep.subr.mxu0 0.0
    %426 = vmatpush1.msra.mxu0 0.0
    %427 = vmatprep.subr.mxu0 0.0
    %428 = vmatpush1.msra.mxu0 0.0
    %429 = vmatprep.subr.mxu0 0.0
    %430 = vmatpush1.msra.mxu0 0.0
    %431 = vmatprep.subr.mxu0 0.0
    %432 = vmatpush1.msra.mxu0 0.0
    %433 = vmatprep.subr.mxu0 0.0
    %434 = vmatpush1.msra.mxu0 0.0
    %435 = vmatprep.subr.mxu0 0.0
    %436 = vmatpush1.msra.mxu0 0.0
    %437 = vmatprep.subr.mxu0 0.0
    %438 = vmatpush1.msra.mxu0 0.0
    %439 = vmatprep.subr.mxu0 0.0
    %440 = vmatpush1.msra.mxu0 0.0
    %441 = vmatprep.subr.mxu0 0.0
    %442 = vmatpush1.msra.mxu0 0.0
    %443 = vmatprep.subr.mxu0 0.0
    %444 = vmatpush1.msra.mxu0 0.0
    %445 = vmatprep.subr.mxu0 0.0
    %446 = vmatpush1.msra.mxu0 0.0
    %447 = vmatprep.subr.mxu0 0.0
    %448 = vmatpush1.msra.mxu0 0.0
    %449 = vmatprep.mubr.f32.mxu0 0.0
    %450 = vmatmul.mubr.f32.gmra.mrb[0].mxu0 %v186
    %v451 = vpop.f32.mrb[0].mxu0
    %v452 = vadd.f32 0.0, %v451
    %v453 = vpop.f32.mrb[0].mxu0
    %454 = vdwg.mxu0
    %v455 = vadd.f32 %v365, %v452
    %s456 = scalar_lea.vmem [#allocation2], 384
    %v457 = vld [vmem:[%s456] sm:$0xff]
    %v458 = vld [vmem:[%s456 + $0x8] sm:$0xff]
    %v459 = vld [vmem:[%s456 + $0x10] sm:$0xff]
    %v460 = vld [vmem:[%s456 + $0x18] sm:$0xff]
    %v461 = vld [vmem:[%s456 + $0x20] sm:$0xff]
    %v462 = vld [vmem:[%s456 + $0x28] sm:$0xff]
    %v463 = vld [vmem:[%s456 + $0x30] sm:$0xff]
    %v464 = vld [vmem:[%s456 + $0x38] sm:$0xff]
    %v465 = vld [vmem:[%s456 + $0x40] sm:$0xff]
    %v466 = vld [vmem:[%s456 + $0x48] sm:$0xff]
    %v467 = vld [vmem:[%s456 + $0x50] sm:$0xff]
    %v468 = vld [vmem:[%s456 + $0x58] sm:$0xff]
    %v469 = vld [vmem:[%s456 + $0x60] sm:$0xff]
    %v470 = vld [vmem:[%s456 + $0x68] sm:$0xff]
    %v471 = vld [vmem:[%s456 + $0x70] sm:$0xff]
    %v472 = vld [vmem:[%s456 + $0x78] sm:$0xff]
    %473 = vmatprep.subr.mxu0 0.0
    %474 = vmatpush1.msra.mxu0 %v457
    %475 = vmatprep.subr.mxu0 0.0
    %476 = vmatpush1.msra.mxu0 %v458
    %477 = vmatprep.subr.mxu0 0.0
    %478 = vmatpush1.msra.mxu0 %v459
    %479 = vmatprep.subr.mxu0 0.0
    %480 = vmatpush1.msra.mxu0 %v460
    %481 = vmatprep.subr.mxu0 0.0
    %482 = vmatpush1.msra.mxu0 %v461
    %483 = vmatprep.subr.mxu0 0.0
    %484 = vmatpush1.msra.mxu0 %v462
    %485 = vmatprep.subr.mxu0 0.0
    %486 = vmatpush1.msra.mxu0 %v463
    %487 = vmatprep.subr.mxu0 0.0
    %488 = vmatpush1.msra.mxu0 %v464
    %489 = vmatprep.subr.mxu0 0.0
    %490 = vmatpush1.msra.mxu0 %v465
    %491 = vmatprep.subr.mxu0 0.0
    %492 = vmatpush1.msra.mxu0 %v466
    %493 = vmatprep.subr.mxu0 0.0
    %494 = vmatpush1.msra.mxu0 %v467
    %495 = vmatprep.subr.mxu0 0.0
    %496 = vmatpush1.msra.mxu0 %v468
    %497 = vmatprep.subr.mxu0 0.0
    %498 = vmatpush1.msra.mxu0 %v469
    %499 = vmatprep.subr.mxu0 0.0
    %500 = vmatpush1.msra.mxu0 %v470
    %501 = vmatprep.subr.mxu0 0.0
    %502 = vmatpush1.msra.mxu0 %v471
    %503 = vmatprep.subr.mxu0 0.0
    %504 = vmatpush1.msra.mxu0 %v472
    %505 = vmatprep.subr.mxu0 0.0
    %506 = vmatpush1.msra.mxu0 0.0
    %507 = vmatprep.subr.mxu0 0.0
    %508 = vmatpush1.msra.mxu0 0.0
    %509 = vmatprep.subr.mxu0 0.0
    %510 = vmatpush1.msra.mxu0 0.0
    %511 = vmatprep.subr.mxu0 0.0
    %512 = vmatpush1.msra.mxu0 0.0
    %513 = vmatprep.subr.mxu0 0.0
    %514 = vmatpush1.msra.mxu0 0.0
    %515 = vmatprep.subr.mxu0 0.0
    %516 = vmatpush1.msra.mxu0 0.0
    %517 = vmatprep.subr.mxu0 0.0
    %518 = vmatpush1.msra.mxu0 0.0
    %519 = vmatprep.subr.mxu0 0.0
    %520 = vmatpush1.msra.mxu0 0.0
    %521 = vmatprep.subr.mxu0 0.0
    %522 = vmatpush1.msra.mxu0 0.0
    %523 = vmatprep.subr.mxu0 0.0
    %524 = vmatpush1.msra.mxu0 0.0
    %525 = vmatprep.subr.mxu0 0.0
    %526 = vmatpush1.msra.mxu0 0.0
    %527 = vmatprep.subr.mxu0 0.0
    %528 = vmatpush1.msra.mxu0 0.0
    %529 = vmatprep.subr.mxu0 0.0
    %530 = vmatpush1.msra.mxu0 0.0
    %531 = vmatprep.subr.mxu0 0.0
    %532 = vmatpush1.msra.mxu0 0.0
    %533 = vmatprep.subr.mxu0 0.0
    %534 = vmatpush1.msra.mxu0 0.0
    %535 = vmatprep.subr.mxu0 0.0
    %536 = vmatpush1.msra.mxu0 0.0
    %537 = vmatprep.mubr.f32.mxu0 0.0
    %538 = vmatmul.mubr.f32.gmra.mrb[0].mxu0 %v190
    %v539 = vpop.f32.mrb[0].mxu0
    %v540 = vadd.f32 0.0, %v539
    %v541 = vpop.f32.mrb[0].mxu0
    %542 = vdwg.mxu0
    %v543 = vadd.f32 %v455, %v540
    %s544 = scalar_lea.vmem [#allocation2], 512
    %v545 = vld [vmem:[%s544] sm:$0xff]
    %v546 = vld [vmem:[%s544 + $0x8] sm:$0xff]
    %v547 = vld [vmem:[%s544 + $0x10] sm:$0xff]
    %v548 = vld [vmem:[%s544 + $0x18] sm:$0xff]
    %v549 = vld [vmem:[%s544 + $0x20] sm:$0xff]
    %v550 = vld [vmem:[%s544 + $0x28] sm:$0xff]
    %v551 = vld [vmem:[%s544 + $0x30] sm:$0xff]
    %v552 = vld [vmem:[%s544 + $0x38] sm:$0xff]
    %v553 = vld [vmem:[%s544 + $0x40] sm:$0xff]
    %v554 = vld [vmem:[%s544 + $0x48] sm:$0xff]
    %v555 = vld [vmem:[%s544 + $0x50] sm:$0xff]
    %v556 = vld [vmem:[%s544 + $0x58] sm:$0xff]
    %v557 = vld [vmem:[%s544 + $0x60] sm:$0xff]
    %v558 = vld [vmem:[%s544 + $0x68] sm:$0xff]
    %v559 = vld [vmem:[%s544 + $0x70] sm:$0xff]
    %v560 = vld [vmem:[%s544 + $0x78] sm:$0xff]
    %561 = vmatprep.subr.mxu0 0.0
    %562 = vmatpush1.msra.mxu0 %v545
    %563 = vmatprep.subr.mxu0 0.0
    %564 = vmatpush1.msra.mxu0 %v546
    %565 = vmatprep.subr.mxu0 0.0
    %566 = vmatpush1.msra.mxu0 %v547
    %567 = vmatprep.subr.mxu0 0.0
    %568 = vmatpush1.msra.mxu0 %v548
    %569 = vmatprep.subr.mxu0 0.0
    %570 = vmatpush1.msra.mxu0 %v549
    %571 = vmatprep.subr.mxu0 0.0
    %572 = vmatpush1.msra.mxu0 %v550
    %573 = vmatprep.subr.mxu0 0.0
    %574 = vmatpush1.msra.mxu0 %v551
    %575 = vmatprep.subr.mxu0 0.0
    %576 = vmatpush1.msra.mxu0 %v552
    %577 = vmatprep.subr.mxu0 0.0
    %578 = vmatpush1.msra.mxu0 %v553
    %579 = vmatprep.subr.mxu0 0.0
    %580 = vmatpush1.msra.mxu0 %v554
    %581 = vmatprep.subr.mxu0 0.0
    %582 = vmatpush1.msra.mxu0 %v555
    %583 = vmatprep.subr.mxu0 0.0
    %584 = vmatpush1.msra.mxu0 %v556
    %585 = vmatprep.subr.mxu0 0.0
    %586 = vmatpush1.msra.mxu0 %v557
    %587 = vmatprep.subr.mxu0 0.0
    %588 = vmatpush1.msra.mxu0 %v558
    %589 = vmatprep.subr.mxu0 0.0
    %590 = vmatpush1.msra.mxu0 %v559
    %591 = vmatprep.subr.mxu0 0.0
    %592 = vmatpush1.msra.mxu0 %v560
    %593 = vmatprep.subr.mxu0 0.0
    %594 = vmatpush1.msra.mxu0 0.0
    %595 = vmatprep.subr.mxu0 0.0
    %596 = vmatpush1.msra.mxu0 0.0
    %597 = vmatprep.subr.mxu0 0.0
    %598 = vmatpush1.msra.mxu0 0.0
    %599 = vmatprep.subr.mxu0 0.0
    %600 = vmatpush1.msra.mxu0 0.0
    %601 = vmatprep.subr.mxu0 0.0
    %602 = vmatpush1.msra.mxu0 0.0
    %603 = vmatprep.subr.mxu0 0.0
    %604 = vmatpush1.msra.mxu0 0.0
    %605 = vmatprep.subr.mxu0 0.0
    %606 = vmatpush1.msra.mxu0 0.0
    %607 = vmatprep.subr.mxu0 0.0
    %608 = vmatpush1.msra.mxu0 0.0
    %609 = vmatprep.subr.mxu0 0.0
    %610 = vmatpush1.msra.mxu0 0.0
    %611 = vmatprep.subr.mxu0 0.0
    %612 = vmatpush1.msra.mxu0 0.0
    %613 = vmatprep.subr.mxu0 0.0
    %614 = vmatpush1.msra.mxu0 0.0
    %615 = vmatprep.subr.mxu0 0.0
    %616 = vmatpush1.msra.mxu0 0.0
    %617 = vmatprep.subr.mxu0 0.0
    %618 = vmatpush1.msra.mxu0 0.0
    %619 = vmatprep.subr.mxu0 0.0
    %620 = vmatpush1.msra.mxu0 0.0
    %621 = vmatprep.subr.mxu0 0.0
    %622 = vmatpush1.msra.mxu0 0.0
    %623 = vmatprep.subr.mxu0 0.0
    %624 = vmatpush1.msra.mxu0 0.0
    %625 = vmatprep.mubr.f32.mxu0 0.0
    %626 = vmatmul.mubr.f32.gmra.mrb[0].mxu0 %v194
    %v627 = vpop.f32.mrb[0].mxu0
    %v628 = vadd.f32 0.0, %v627
    %v629 = vpop.f32.mrb[0].mxu0
    %630 = vdwg.mxu0
    %v631 = vadd.f32 %v543, %v628
    %s632 = scalar_lea.vmem [#allocation2], 640
    %v633 = vld [vmem:[%s632] sm:$0xff]
    %v634 = vld [vmem:[%s632 + $0x8] sm:$0xff]
    %v635 = vld [vmem:[%s632 + $0x10] sm:$0xff]
    %v636 = vld [vmem:[%s632 + $0x18] sm:$0xff]
    %v637 = vld [vmem:[%s632 + $0x20] sm:$0xff]
    %v638 = vld [vmem:[%s632 + $0x28] sm:$0xff]
    %v639 = vld [vmem:[%s632 + $0x30] sm:$0xff]
    %v640 = vld [vmem:[%s632 + $0x38] sm:$0xff]
    %v641 = vld [vmem:[%s632 + $0x40] sm:$0xff]
    %v642 = vld [vmem:[%s632 + $0x48] sm:$0xff]
    %v643 = vld [vmem:[%s632 + $0x50] sm:$0xff]
    %v644 = vld [vmem:[%s632 + $0x58] sm:$0xff]
    %v645 = vld [vmem:[%s632 + $0x60] sm:$0xff]
    %v646 = vld [vmem:[%s632 + $0x68] sm:$0xff]
    %v647 = vld [vmem:[%s632 + $0x70] sm:$0xff]
    %v648 = vld [vmem:[%s632 + $0x78] sm:$0xff]
    %649 = vmatprep.subr.mxu0 0.0
    %650 = vmatpush1.msra.mxu0 %v633
    %651 = vmatprep.subr.mxu0 0.0
    %652 = vmatpush1.msra.mxu0 %v634
    %653 = vmatprep.subr.mxu0 0.0
    %654 = vmatpush1.msra.mxu0 %v635
    %655 = vmatprep.subr.mxu0 0.0
    %656 = vmatpush1.msra.mxu0 %v636
    %657 = vmatprep.subr.mxu0 0.0
    %658 = vmatpush1.msra.mxu0 %v637
    %659 = vmatprep.subr.mxu0 0.0
    %660 = vmatpush1.msra.mxu0 %v638
    %661 = vmatprep.subr.mxu0 0.0
    %662 = vmatpush1.msra.mxu0 %v639
    %663 = vmatprep.subr.mxu0 0.0
    %664 = vmatpush1.msra.mxu0 %v640
    %665 = vmatprep.subr.mxu0 0.0
    %666 = vmatpush1.msra.mxu0 %v641
    %667 = vmatprep.subr.mxu0 0.0
    %668 = vmatpush1.msra.mxu0 %v642
    %669 = vmatprep.subr.mxu0 0.0
    %670 = vmatpush1.msra.mxu0 %v643
    %671 = vmatprep.subr.mxu0 0.0
    %672 = vmatpush1.msra.mxu0 %v644
    %673 = vmatprep.subr.mxu0 0.0
    %674 = vmatpush1.msra.mxu0 %v645
    %675 = vmatprep.subr.mxu0 0.0
    %676 = vmatpush1.msra.mxu0 %v646
    %677 = vmatprep.subr.mxu0 0.0
    %678 = vmatpush1.msra.mxu0 %v647
    %679 = vmatprep.subr.mxu0 0.0
    %680 = vmatpush1.msra.mxu0 %v648
    %681 = vmatprep.subr.mxu0 0.0
    %682 = vmatpush1.msra.mxu0 0.0
    %683 = vmatprep.subr.mxu0 0.0
    %684 = vmatpush1.msra.mxu0 0.0
    %685 = vmatprep.subr.mxu0 0.0
    %686 = vmatpush1.msra.mxu0 0.0
    %687 = vmatprep.subr.mxu0 0.0
    %688 = vmatpush1.msra.mxu0 0.0
    %689 = vmatprep.subr.mxu0 0.0
    %690 = vmatpush1.msra.mxu0 0.0
    %691 = vmatprep.subr.mxu0 0.0
    %692 = vmatpush1.msra.mxu0 0.0
    %693 = vmatprep.subr.mxu0 0.0
    %694 = vmatpush1.msra.mxu0 0.0
    %695 = vmatprep.subr.mxu0 0.0
    %696 = vmatpush1.msra.mxu0 0.0
    %697 = vmatprep.subr.mxu0 0.0
    %698 = vmatpush1.msra.mxu0 0.0
    %699 = vmatprep.subr.mxu0 0.0
    %700 = vmatpush1.msra.mxu0 0.0
    %701 = vmatprep.subr.mxu0 0.0
    %702 = vmatpush1.msra.mxu0 0.0
    %703 = vmatprep.subr.mxu0 0.0
    %704 = vmatpush1.msra.mxu0 0.0
    %705 = vmatprep.subr.mxu0 0.0
    %706 = vmatpush1.msra.mxu0 0.0
    %707 = vmatprep.subr.mxu0 0.0
    %708 = vmatpush1.msra.mxu0 0.0
    %709 = vmatprep.subr.mxu0 0.0
    %710 = vmatpush1.msra.mxu0 0.0
    %711 = vmatprep.subr.mxu0 0.0
    %712 = vmatpush1.msra.mxu0 0.0
    %713 = vmatprep.mubr.f32.mxu0 0.0
    %714 = vmatmul.mubr.f32.gmra.mrb[0].mxu0 %v198
    %v715 = vpop.f32.mrb[0].mxu0
    %v716 = vadd.f32 0.0, %v715
    %v717 = vpop.f32.mrb[0].mxu0
    %718 = vdwg.mxu0
    %v719 = vadd.f32 %v631, %v716
    %s720 = scalar_lea.vmem [#allocation2], 768
    %v721 = vld [vmem:[%s720] sm:$0xff]
    %v722 = vld [vmem:[%s720 + $0x8] sm:$0xff]
    %v723 = vld [vmem:[%s720 + $0x10] sm:$0xff]
    %v724 = vld [vmem:[%s720 + $0x18] sm:$0xff]
    %v725 = vld [vmem:[%s720 + $0x20] sm:$0xff]
    %v726 = vld [vmem:[%s720 + $0x28] sm:$0xff]
    %v727 = vld [vmem:[%s720 + $0x30] sm:$0xff]
    %v728 = vld [vmem:[%s720 + $0x38] sm:$0xff]
    %v729 = vld [vmem:[%s720 + $0x40] sm:$0xff]
    %v730 = vld [vmem:[%s720 + $0x48] sm:$0xff]
    %v731 = vld [vmem:[%s720 + $0x50] sm:$0xff]
    %v732 = vld [vmem:[%s720 + $0x58] sm:$0xff]
    %v733 = vld [vmem:[%s720 + $0x60] sm:$0xff]
    %v734 = vld [vmem:[%s720 + $0x68] sm:$0xff]
    %v735 = vld [vmem:[%s720 + $0x70] sm:$0xff]
    %v736 = vld [vmem:[%s720 + $0x78] sm:$0xff]
    %737 = vmatprep.subr.mxu0 0.0
    %738 = vmatpush1.msra.mxu0 %v721
    %739 = vmatprep.subr.mxu0 0.0
    %740 = vmatpush1.msra.mxu0 %v722
    %741 = vmatprep.subr.mxu0 0.0
    %742 = vmatpush1.msra.mxu0 %v723
    %743 = vmatprep.subr.mxu0 0.0
    %744 = vmatpush1.msra.mxu0 %v724
    %745 = vmatprep.subr.mxu0 0.0
    %746 = vmatpush1.msra.mxu0 %v725
    %747 = vmatprep.subr.mxu0 0.0
    %748 = vmatpush1.msra.mxu0 %v726
    %749 = vmatprep.subr.mxu0 0.0
    %750 = vmatpush1.msra.mxu0 %v727
    %751 = vmatprep.subr.mxu0 0.0
    %752 = vmatpush1.msra.mxu0 %v728
    %753 = vmatprep.subr.mxu0 0.0
    %754 = vmatpush1.msra.mxu0 %v729
    %755 = vmatprep.subr.mxu0 0.0
    %756 = vmatpush1.msra.mxu0 %v730
    %757 = vmatprep.subr.mxu0 0.0
    %758 = vmatpush1.msra.mxu0 %v731
    %759 = vmatprep.subr.mxu0 0.0
    %760 = vmatpush1.msra.mxu0 %v732
    %761 = vmatprep.subr.mxu0 0.0
    %762 = vmatpush1.msra.mxu0 %v733
    %763 = vmatprep.subr.mxu0 0.0
    %764 = vmatpush1.msra.mxu0 %v734
    %765 = vmatprep.subr.mxu0 0.0
    %766 = vmatpush1.msra.mxu0 %v735
    %767 = vmatprep.subr.mxu0 0.0
    %768 = vmatpush1.msra.mxu0 %v736
    %769 = vmatprep.subr.mxu0 0.0
    %770 = vmatpush1.msra.mxu0 0.0
    %771 = vmatprep.subr.mxu0 0.0
    %772 = vmatpush1.msra.mxu0 0.0
    %773 = vmatprep.subr.mxu0 0.0
    %774 = vmatpush1.msra.mxu0 0.0
    %775 = vmatprep.subr.mxu0 0.0
    %776 = vmatpush1.msra.mxu0 0.0
    %777 = vmatprep.subr.mxu0 0.0
    %778 = vmatpush1.msra.mxu0 0.0
    %779 = vmatprep.subr.mxu0 0.0
    %780 = vmatpush1.msra.mxu0 0.0
    %781 = vmatprep.subr.mxu0 0.0
    %782 = vmatpush1.msra.mxu0 0.0
    %783 = vmatprep.subr.mxu0 0.0
    %784 = vmatpush1.msra.mxu0 0.0
    %785 = vmatprep.subr.mxu0 0.0
    %786 = vmatpush1.msra.mxu0 0.0
    %787 = vmatprep.subr.mxu0 0.0
    %788 = vmatpush1.msra.mxu0 0.0
    %789 = vmatprep.subr.mxu0 0.0
    %790 = vmatpush1.msra.mxu0 0.0
    %791 = vmatprep.subr.mxu0 0.0
    %792 = vmatpush1.msra.mxu0 0.0
    %793 = vmatprep.subr.mxu0 0.0
    %794 = vmatpush1.msra.mxu0 0.0
    %795 = vmatprep.subr.mxu0 0.0
    %796 = vmatpush1.msra.mxu0 0.0
    %797 = vmatprep.subr.mxu0 0.0
    %798 = vmatpush1.msra.mxu0 0.0
    %799 = vmatprep.subr.mxu0 0.0
    %800 = vmatpush1.msra.mxu0 0.0
    %801 = vmatprep.mubr.f32.mxu0 0.0
    %802 = vmatmul.mubr.f32.gmra.mrb[0].mxu0 %v202
    %v803 = vpop.f32.mrb[0].mxu0
    %v804 = vadd.f32 0.0, %v803
    %v805 = vpop.f32.mrb[0].mxu0
    %806 = vdwg.mxu0
    %v807 = vadd.f32 %v719, %v804
    %s808 = scalar_lea.vmem [#allocation2], 896
    %v809 = vld [vmem:[%s808] sm:$0xff]
    %v810 = vld [vmem:[%s808 + $0x8] sm:$0xff]
    %v811 = vld [vmem:[%s808 + $0x10] sm:$0xff]
    %v812 = vld [vmem:[%s808 + $0x18] sm:$0xff]
    %v813 = vld [vmem:[%s808 + $0x20] sm:$0xff]
    %v814 = vld [vmem:[%s808 + $0x28] sm:$0xff]
    %v815 = vld [vmem:[%s808 + $0x30] sm:$0xff]
    %v816 = vld [vmem:[%s808 + $0x38] sm:$0xff]
    %v817 = vld [vmem:[%s808 + $0x40] sm:$0xff]
    %v818 = vld [vmem:[%s808 + $0x48] sm:$0xff]
    %v819 = vld [vmem:[%s808 + $0x50] sm:$0xff]
    %v820 = vld [vmem:[%s808 + $0x58] sm:$0xff]
    %v821 = vld [vmem:[%s808 + $0x60] sm:$0xff]
    %v822 = vld [vmem:[%s808 + $0x68] sm:$0xff]
    %v823 = vld [vmem:[%s808 + $0x70] sm:$0xff]
    %v824 = vld [vmem:[%s808 + $0x78] sm:$0xff]
    %825 = vmatprep.subr.mxu0 0.0
    %826 = vmatpush1.msra.mxu0 %v809
    %827 = vmatprep.subr.mxu0 0.0
    %828 = vmatpush1.msra.mxu0 %v810
    %829 = vmatprep.subr.mxu0 0.0
    %830 = vmatpush1.msra.mxu0 %v811
    %831 = vmatprep.subr.mxu0 0.0
    %832 = vmatpush1.msra.mxu0 %v812
    %833 = vmatprep.subr.mxu0 0.0
    %834 = vmatpush1.msra.mxu0 %v813
    %835 = vmatprep.subr.mxu0 0.0
    %836 = vmatpush1.msra.mxu0 %v814
    %837 = vmatprep.subr.mxu0 0.0
    %838 = vmatpush1.msra.mxu0 %v815
    %839 = vmatprep.subr.mxu0 0.0
    %840 = vmatpush1.msra.mxu0 %v816
    %841 = vmatprep.subr.mxu0 0.0
    %842 = vmatpush1.msra.mxu0 %v817
    %843 = vmatprep.subr.mxu0 0.0
    %844 = vmatpush1.msra.mxu0 %v818
    %845 = vmatprep.subr.mxu0 0.0
    %846 = vmatpush1.msra.mxu0 %v819
    %847 = vmatprep.subr.mxu0 0.0
    %848 = vmatpush1.msra.mxu0 %v820
    %849 = vmatprep.subr.mxu0 0.0
    %850 = vmatpush1.msra.mxu0 %v821
    %851 = vmatprep.subr.mxu0 0.0
    %852 = vmatpush1.msra.mxu0 %v822
    %853 = vmatprep.subr.mxu0 0.0
    %854 = vmatpush1.msra.mxu0 %v823
    %855 = vmatprep.subr.mxu0 0.0
    %856 = vmatpush1.msra.mxu0 %v824
    %857 = vmatprep.subr.mxu0 0.0
    %858 = vmatpush1.msra.mxu0 0.0
    %859 = vmatprep.subr.mxu0 0.0
    %860 = vmatpush1.msra.mxu0 0.0
    %861 = vmatprep.subr.mxu0 0.0
    %862 = vmatpush1.msra.mxu0 0.0
    %863 = vmatprep.subr.mxu0 0.0
    %864 = vmatpush1.msra.mxu0 0.0
    %865 = vmatprep.subr.mxu0 0.0
    %866 = vmatpush1.msra.mxu0 0.0
    %867 = vmatprep.subr.mxu0 0.0
    %868 = vmatpush1.msra.mxu0 0.0
    %869 = vmatprep.subr.mxu0 0.0
    %870 = vmatpush1.msra.mxu0 0.0
    %871 = vmatprep.subr.mxu0 0.0
    %872 = vmatpush1.msra.mxu0 0.0
    %873 = vmatprep.subr.mxu0 0.0
    %874 = vmatpush1.msra.mxu0 0.0
    %875 = vmatprep.subr.mxu0 0.0
    %876 = vmatpush1.msra.mxu0 0.0
    %877 = vmatprep.subr.mxu0 0.0
    %878 = vmatpush1.msra.mxu0 0.0
    %879 = vmatprep.subr.mxu0 0.0
    %880 = vmatpush1.msra.mxu0 0.0
    %881 = vmatprep.subr.mxu0 0.0
    %882 = vmatpush1.msra.mxu0 0.0
    %883 = vmatprep.subr.mxu0 0.0
    %884 = vmatpush1.msra.mxu0 0.0
    %885 = vmatprep.subr.mxu0 0.0
    %886 = vmatpush1.msra.mxu0 0.0
    %887 = vmatprep.subr.mxu0 0.0
    %888 = vmatpush1.msra.mxu0 0.0
    %889 = vmatprep.mubr.f32.mxu0 0.0
    %890 = vmatmul.mubr.f32.gmra.mrb[0].mxu0 %v206
    %v891 = vpop.f32.mrb[0].mxu0
    %v892 = vadd.f32 0.0, %v891
    %v893 = vpop.f32.mrb[0].mxu0
    %894 = vdwg.mxu0
    %v895 = vadd.f32 %v807, %v892
    %s896 = scalar_lea.vmem [#allocation2], 1024
    %v897 = vld [vmem:[%s896] sm:$0xff]
    %v898 = vld [vmem:[%s896 + $0x8] sm:$0xff]
    %v899 = vld [vmem:[%s896 + $0x10] sm:$0xff]
    %v900 = vld [vmem:[%s896 + $0x18] sm:$0xff]
    %v901 = vld [vmem:[%s896 + $0x20] sm:$0xff]
    %v902 = vld [vmem:[%s896 + $0x28] sm:$0xff]
    %v903 = vld [vmem:[%s896 + $0x30] sm:$0xff]
    %v904 = vld [vmem:[%s896 + $0x38] sm:$0xff]
    %v905 = vld [vmem:[%s896 + $0x40] sm:$0xff]
    %v906 = vld [vmem:[%s896 + $0x48] sm:$0xff]
    %v907 = vld [vmem:[%s896 + $0x50] sm:$0xff]
    %v908 = vld [vmem:[%s896 + $0x58] sm:$0xff]
    %v909 = vld [vmem:[%s896 + $0x60] sm:$0xff]
    %v910 = vld [vmem:[%s896 + $0x68] sm:$0xff]
    %v911 = vld [vmem:[%s896 + $0x70] sm:$0xff]
    %v912 = vld [vmem:[%s896 + $0x78] sm:$0xff]
    %913 = vmatprep.subr.mxu0 0.0
    %914 = vmatpush1.msra.mxu0 %v897
    %915 = vmatprep.subr.mxu0 0.0
    %916 = vmatpush1.msra.mxu0 %v898
    %917 = vmatprep.subr.mxu0 0.0
    %918 = vmatpush1.msra.mxu0 %v899
    %919 = vmatprep.subr.mxu0 0.0
    %920 = vmatpush1.msra.mxu0 %v900
    %921 = vmatprep.subr.mxu0 0.0
    %922 = vmatpush1.msra.mxu0 %v901
    %923 = vmatprep.subr.mxu0 0.0
    %924 = vmatpush1.msra.mxu0 %v902
    %925 = vmatprep.subr.mxu0 0.0
    %926 = vmatpush1.msra.mxu0 %v903
    %927 = vmatprep.subr.mxu0 0.0
    %928 = vmatpush1.msra.mxu0 %v904
    %929 = vmatprep.subr.mxu0 0.0
    %930 = vmatpush1.msra.mxu0 %v905
    %931 = vmatprep.subr.mxu0 0.0
    %932 = vmatpush1.msra.mxu0 %v906
    %933 = vmatprep.subr.mxu0 0.0
    %934 = vmatpush1.msra.mxu0 %v907
    %935 = vmatprep.subr.mxu0 0.0
    %936 = vmatpush1.msra.mxu0 %v908
    %937 = vmatprep.subr.mxu0 0.0
    %938 = vmatpush1.msra.mxu0 %v909
    %939 = vmatprep.subr.mxu0 0.0
    %940 = vmatpush1.msra.mxu0 %v910
    %941 = vmatprep.subr.mxu0 0.0
    %942 = vmatpush1.msra.mxu0 %v911
    %943 = vmatprep.subr.mxu0 0.0
    %944 = vmatpush1.msra.mxu0 %v912
    %945 = vmatprep.subr.mxu0 0.0
    %946 = vmatpush1.msra.mxu0 0.0
    %947 = vmatprep.subr.mxu0 0.0
    %948 = vmatpush1.msra.mxu0 0.0
    %949 = vmatprep.subr.mxu0 0.0
    %950 = vmatpush1.msra.mxu0 0.0
    %951 = vmatprep.subr.mxu0 0.0
    %952 = vmatpush1.msra.mxu0 0.0
    %953 = vmatprep.subr.mxu0 0.0
    %954 = vmatpush1.msra.mxu0 0.0
    %955 = vmatprep.subr.mxu0 0.0
    %956 = vmatpush1.msra.mxu0 0.0
    %957 = vmatprep.subr.mxu0 0.0
    %958 = vmatpush1.msra.mxu0 0.0
    %959 = vmatprep.subr.mxu0 0.0
    %960 = vmatpush1.msra.mxu0 0.0
    %961 = vmatprep.subr.mxu0 0.0
    %962 = vmatpush1.msra.mxu0 0.0
    %963 = vmatprep.subr.mxu0 0.0
    %964 = vmatpush1.msra.mxu0 0.0
    %965 = vmatprep.subr.mxu0 0.0
    %966 = vmatpush1.msra.mxu0 0.0
    %967 = vmatprep.subr.mxu0 0.0
    %968 = vmatpush1.msra.mxu0 0.0
    %969 = vmatprep.subr.mxu0 0.0
    %970 = vmatpush1.msra.mxu0 0.0
    %971 = vmatprep.subr.mxu0 0.0
    %972 = vmatpush1.msra.mxu0 0.0
    %973 = vmatprep.subr.mxu0 0.0
    %974 = vmatpush1.msra.mxu0 0.0
    %975 = vmatprep.subr.mxu0 0.0
    %976 = vmatpush1.msra.mxu0 0.0
    %977 = vmatprep.mubr.f32.mxu0 0.0
    %978 = vmatmul.mubr.f32.gmra.mrb[0].mxu0 %v210
    %v979 = vpop.f32.mrb[0].mxu0
    %v980 = vadd.f32 0.0, %v979
    %v981 = vpop.f32.mrb[0].mxu0
    %982 = vdwg.mxu0
    %v983 = vadd.f32 %v895, %v980
    %984 = vst [vmem:[#allocation5] sm:$0xff] %v983
    // Predicated region
    $region14: #{decoder_forward.1} parent=1 // pred_check
      _
    $region15: #{decoder_forward.1} parent=1 // pred_check_branch
      %986 = sbr.rel (0) target = $region17
    $region16: #{decoder_forward.1} parent=1 // pred_region
      %s988 = ssub.s32 128, 128
      %989 = vsyncadd [#allocation4], %s988
      %s991 = sshll.u32 [#allocation5], 4
      %s992 = int_to_ptr.vmem [resolvable:$true] %s991
      %994 = dma.vmem_to_hbm [thread:$0]  %s992, 128, %s2, [#allocation4]
    $region17: #{decoder_forward.1} parent=1 // pred_fallthru
      _
    // Predicated region
    $region18: #{decoder_forward.1} parent=1 // pred_check
      _
    $region19: #{decoder_forward.1} parent=1 // pred_check_branch
      %996 = sbr.rel (0) target = $region21
    $region20: #{decoder_forward.1} parent=1 // pred_region
      %997 = dma.done [#allocation4], 128
    $region21: #{decoder_forward.1} parent=1 // pred_fallthru
      _
    %998 = vsyncpa [#allocation3], 1
    %999 = vsyncpa [#allocation4], 1

</llo_original>
